<compile_context>
chip_gen: v7x
topology: tpu7x:2x2x1
jax: 0.10.0
libtpu: 0.0.40
codegen_flags: <defaults>
</compile_context>

<pallas_src>
import jax
import jax.numpy as jnp
from jax.experimental import pallas as pl
from jax.experimental.pallas import tpu as pltpu

BN_EPS = 1e-5


# ------------------------------ fused forward -------------------------------

def resnet1d_forward(x, params, *, kernel_size=3, dilation=1):
    """Fused ResNet1D forward: (N, Cin, L) float32 -> (N, C, L) float32."""
    assert kernel_size % 2 == 1, "roll-based halo scheme requires odd kernel_size"
    N, Cin0, L = x.shape
    C = params["gate"]["w"].shape[0]                       # channel_size
    blocks = [blk for layer in params["layers"] for blk in layer]
    n_blocks = len(blocks)
    K = kernel_size
    dil = dilation
    pad = dil * ((K - 1) // 2)                             # PyTorch 'same' (odd K)
    Ls = L + 2 * pad                                       # per-batch slab width
    NL = pl.cdiv(N * Ls, 128) * 128                        # lane-dense width
    Cin_p = max(8, ((Cin0 + 7) // 8) * 8)                  # sublane-align in-chans
    inv_count = 1.0 / float(N * L)                         # BN normalizer
    n_convs = 1 + 2 * n_blocks

    # ---------------- wrapper-side layout (plain XLA ops, done once) --------
    # (N, Cin, L) -> (Cin_p, NL): each batch element in its own zero-haloed slab.
    xp = jnp.pad(x.astype(jnp.float32),
                 ((0, 0), (0, Cin_p - Cin0), (pad, Ls - L - pad)))
    x_nl = jnp.transpose(xp, (1, 0, 2)).reshape(Cin_p, N * Ls)
    x_nl = jnp.pad(x_nl, ((0, 0), (0, NL - N * Ls)))

    lane = jnp.arange(NL)
    pos = lane % Ls
    valid = (lane < N * Ls) & (pos >= pad) & (pos < pad + L)
    mask_row = valid.astype(jnp.float32)[None, :]          # (1, NL) validity mask

    # gate conv weight (C, Cin, 1) -> (C, Cin_p)
    wg = params["gate"]["w"][:, :, 0]
    wg = jnp.pad(wg, ((0, 0), (0, Cin_p - Cin0))).astype(jnp.float32)

    # Block conv weights, pre-split per tap and packed into a single array:
    # index (conv_idx * K + t) with conv_idx = 2*b (first conv) / 2*b+1 (second).
    w_taps = []
    for blk in blocks:
        for w in (blk["w1"], blk["w2"]):
            for t in range(K):
                w_taps.append(w[:, :, t])
    if w_taps:
        w_blk = jnp.stack(w_taps, axis=0).astype(jnp.float32)   # (2*nb*K, C, C)
    else:
        w_blk = jnp.zeros((1, C, C), jnp.float32)               # unused placeholder

    # BN gamma/beta packed into one (C, 2*n_convs) array: conv j -> cols 2j, 2j+1.
    bn_cols = [params["gate"]["gamma"], params["gate"]["beta"]]
    for blk in blocks:
        bn_cols += [blk["g1"], blk["b1"], blk["g2"], blk["b2"]]
    bn_packed = jnp.concatenate([c.reshape(C, 1) for c in bn_cols],
                                axis=1).astype(jnp.float32)      # (C, 2*n_convs)
    assert bn_packed.shape == (C, 2 * n_convs)

    # -------------------------------- kernel --------------------------------
    def kernel(x_ref, m_ref, wg_ref, wblk_ref, bn_ref, out_ref):
        m = m_ref[...]                                     # (1, NL)

        def bn_apply(y, j):
            # BatchNorm1d, training-mode batch stats over the N*L valid
            # positions (single-pass masked sum / sum-of-squares, f32), then
            # a per-channel affine y*a + b (2 full-size ops instead of 4).
            ym = y * m
            s1 = jnp.sum(ym, axis=-1, keepdims=True)       # (C, 1)
            s2 = jnp.sum(ym * y, axis=-1, keepdims=True)   # (C, 1)
            mean = s1 * inv_count
            var = s2 * inv_count - mean * mean             # biased variance
            g = bn_ref[:, 2 * j: 2 * j + 1]                # (C, 1) static slices
            b = bn_ref[:, 2 * j + 1: 2 * j + 2]
            a = g * jax.lax.rsqrt(var + BN_EPS)            # (C, 1) cheap scalars
            return y * a + (b - mean * a)

        def elu(v):                                        # ELU(alpha=1)
            # select discards the exp(+large)=inf branch; no NaN blending.
            return jnp.where(v > 0.0, v, jnp.exp(v) - 1.0)

        def dilated_conv(h, conv_idx):
            # K accumulated MXU dots; taps via static XLU lane rolls (free slot).
            y = None
            for t in range(K):
                s = (pad - t * dil) % NL                   # static lane roll
                ht = pltpu.roll(h, shift=s, axis=1) if s else h
                wt = wblk_ref[conv_idx * K + t]            # (C, C), static index
                d = jnp.dot(wt, ht, preferred_element_type=jnp.float32)
                y = d if y is None else y + d
            return y                                       # (C, NL)

        # gate: Conv1d(k=1) -> BN -> ELU.  Re-mask so halos stay exactly zero
        # (required by the roll-based taps of every following dilated conv).
        h = jnp.dot(wg_ref[...], x_ref[...], preferred_element_type=jnp.float32)
        h = elu(bn_apply(h, 0)) * m

        # residual blocks: conv->BN->ELU->conv->BN (+residual) -> ELU
        for b in range(n_blocks):
            res = h
            h = elu(bn_apply(dilated_conv(h, 2 * b), 1 + 2 * b)) * m
            h = bn_apply(dilated_conv(h, 2 * b + 1), 2 + 2 * b)
            h = elu(h + res) * m
        out_ref[...] = h                                   # single lane-dense store

    def full(a):
        nd = a.ndim
        return pl.BlockSpec(a.shape, lambda i, _nd=nd: (0,) * _nd)

    out_nl = pl.pallas_call(
        kernel,
        out_shape=jax.ShapeDtypeStruct((C, NL), jnp.float32),
        grid=(1,),
        in_specs=[full(x_nl), full(mask_row), full(wg), full(w_blk),
                  full(bn_packed)],
        out_specs=pl.BlockSpec((C, NL), lambda i: (0, 0)),
        compiler_params=pltpu.CompilerParams(
            dimension_semantics=("arbitrary",),
            # Raise v5e/v6e's small default scoped limit; stays under v7x's
            # 64 MiB physical cap (real v7x fix is lane tiling, see TODO).
            vmem_limit_bytes=48 * 1024 * 1024),
    )(x_nl, mask_row, wg, w_blk, bn_packed)

    # (C, NL) -> (N, C, L): strip halos / lane padding.
    out = out_nl[:, :N * Ls].reshape(C, N, Ls)
    return jnp.transpose(out, (1, 0, 2))[:, :, pad:pad + L]


# ----------------------------- parameter setup ------------------------------

def _conv_weight(key, cout, cin, k):
    # Deterministic synthetic init (kaiming-ish scale), PyTorch layout (Cout,Cin,K).
    scale = 1.0 / jnp.sqrt(jnp.float32(cin * k))
    return jax.random.normal(key, (cout, cin, k), jnp.float32) * scale


def init_params(key, in_channels, channel_size, deepths, kernel_size):
    n_convs = 1 + 2 * sum(deepths)
    keys = jax.random.split(key, n_convs)
    ki = 0

    def bn_params(cout):
        # PyTorch BatchNorm1d init: weight=1, bias=0.
        return jnp.ones((cout, 1), jnp.float32), jnp.zeros((cout, 1), jnp.float32)

    g_gamma, g_beta = bn_params(channel_size)
    params = {"gate": {"w": _conv_weight(keys[ki], channel_size, in_channels, 1),
                       "gamma": g_gamma, "beta": g_beta}}
    ki += 1

    layers = []
    for n_layer in deepths:
        blks = []
        for _ in range(n_layer):
            g1, b1 = bn_params(channel_size)
            g2, b2 = bn_params(channel_size)
            blks.append({
                "w1": _conv_weight(keys[ki], channel_size, channel_size, kernel_size),
                "g1": g1, "b1": b1,
                "w2": _conv_weight(keys[ki + 1], channel_size, channel_size, kernel_size),
                "g2": g2, "b2": b2,
            })
            ki += 2
        layers.append(blks)
    params["layers"] = layers
    return params


# -------------------------- pure-JAX reference ------------------------------

def _reference_forward(x, params, *, kernel_size=3, dilation=1):
    def conv1d(h, w, dil):
        k = w.shape[-1]
        p = dil * ((k - 1) // 2)
        hp = jnp.pad(h, ((0, 0), (0, 0), (p, p)))
        L = h.shape[-1]
        y = jnp.zeros((h.shape[0], w.shape[0], L), jnp.float32)
        for t in range(k):
            y = y + jnp.einsum("oc,ncl->nol", w[:, :, t],
                               hp[:, :, t * dil: t * dil + L],
                               precision=jax.lax.Precision.HIGHEST)
        return y

    def bn(h, g, b):
        mean = jnp.mean(h, axis=(0, 2), keepdims=True)
        var = jnp.mean(jnp.square(h - mean), axis=(0, 2), keepdims=True)
        return (h - mean) * jax.lax.rsqrt(var + BN_EPS) * g[None] + b[None]

    def elu(v):
        return jnp.where(v > 0.0, v, jnp.expm1(jnp.minimum(v, 0.0)))

    h = elu(bn(conv1d(x, params["gate"]["w"], 1),
               params["gate"]["gamma"], params["gate"]["beta"]))
    for layer in params["layers"]:
        for blk in layer:
            res = h
            h = elu(bn(conv1d(h, blk["w1"], dilation), blk["g1"], blk["b1"]))
            h = bn(conv1d(h, blk["w2"], dilation), blk["g2"], blk["b2"]) + res
            h = elu(h)
    return h


# --------------------------------- driver -----------------------------------

if __name__ == "__main__":
    key = jax.random.PRNGKey(0)
    kx, kp = jax.random.split(key)

    # Small config consistent with ResNet1D(in_channels, deepths, ...).
    N, in_channels, L = 2, 4, 16
    channel_size = 32
    deepths = (1, 1)
    kernel_size = 3
    dilation = 1

    x = jax.random.normal(kx, (N, in_channels, L), jnp.float32)
    params = init_params(kp, in_channels, channel_size, deepths, kernel_size)

    out = resnet1d_forward(x, params, kernel_size=kernel_size, dilation=dilation)
    jax.block_until_ready(out)
    assert out.shape == (N, channel_size, L)

    ref = _reference_forward(x, params, kernel_size=kernel_size, dilation=dilation)
    err = float(jnp.max(jnp.abs(out - ref)))
    assert err < 5e-2, f"max abs error vs reference: {err}"

    print("KERNEL_OK")
</pallas_src>

<mosaic_0001>
module attributes {stable_mosaic.version = 11 : i64} {
  func.func @kernel(%arg0: i32, %arg1: memref<8x128xf32, #tpu.memory_space<vmem>>, %arg2: memref<1x128xf32, #tpu.memory_space<vmem>>, %arg3: memref<32x8xf32, #tpu.memory_space<vmem>>, %arg4: memref<12x32x32xf32, #tpu.memory_space<vmem>>, %arg5: memref<32x10xf32, #tpu.memory_space<vmem>>, %arg6: memref<32x128xf32, #tpu.memory_space<vmem>>) attributes {dimension_semantics = [#tpu.dimension_semantics<arbitrary>], iteration_bounds = array<i64: 1>, scalar_prefetch = 0 : i64, scratch_operands = 0 : i64, tpu.core_type = #tpu.core_type<tc>, window_params = [{pipeline_mode = #tpu.pipeline_mode<synchronous>, transform_indices = @transform_0, window_bounds = array<i64: 8, 128>}, {pipeline_mode = #tpu.pipeline_mode<synchronous>, transform_indices = @transform_1, window_bounds = array<i64: 1, 128>}, {pipeline_mode = #tpu.pipeline_mode<synchronous>, transform_indices = @transform_2, window_bounds = array<i64: 32, 8>}, {pipeline_mode = #tpu.pipeline_mode<synchronous>, transform_indices = @transform_3, window_bounds = array<i64: 12, 32, 32>}, {pipeline_mode = #tpu.pipeline_mode<synchronous>, transform_indices = @transform_4, window_bounds = array<i64: 32, 10>}, {pipeline_mode = #tpu.pipeline_mode<synchronous>, transform_indices = @transform_5, window_bounds = array<i64: 32, 128>}]} {
    %c0 = arith.constant 0 : index
    %c0_0 = arith.constant 0 : index
    %0 = vector.load %arg2[%c0, %c0_0] : memref<1x128xf32, #tpu.memory_space<vmem>>, vector<1x128xf32>
    %c0_1 = arith.constant 0 : index
    %c0_2 = arith.constant 0 : index
    %1 = vector.load %arg3[%c0_1, %c0_2] : memref<32x8xf32, #tpu.memory_space<vmem>>, vector<32x8xf32>
    %c0_3 = arith.constant 0 : index
    %c0_4 = arith.constant 0 : index
    %2 = vector.load %arg1[%c0_3, %c0_4] : memref<8x128xf32, #tpu.memory_space<vmem>>, vector<8x128xf32>
    %cst = arith.constant dense<0.000000e+00> : vector<32x128xf32>
    %3 = tpu.matmul %1, %2, %cst {dimension_numbers = #tpu.dot_dimension_numbers<[1], [0], [0], [1], [0, 0, 1, 1], [], []>} : vector<32x8xf32>, vector<8x128xf32>, vector<32x128xf32> -> vector<32x128xf32>
    %4 = vector.broadcast %0 : vector<1x128xf32> to vector<32x128xf32>
    %5 = arith.mulf %3, %4 : vector<32x128xf32>
    %cst_5 = arith.constant dense<0.000000e+00> : vector<32xf32>
    %6 = vector.multi_reduction <add>, %5, %cst_5 [1] : vector<32x128xf32> to vector<32xf32>
    %7 = vector.shape_cast %6 : vector<32xf32> to vector<32x1xf32>
    %8 = arith.mulf %5, %3 : vector<32x128xf32>
    %cst_6 = arith.constant dense<0.000000e+00> : vector<32xf32>
    %9 = vector.multi_reduction <add>, %8, %cst_6 [1] : vector<32x128xf32> to vector<32xf32>
    %10 = vector.shape_cast %9 : vector<32xf32> to vector<32x1xf32>
    %cst_7 = arith.constant 3.125000e-02 : f32
    %11 = vector.broadcast %cst_7 : f32 to vector<32x1xf32>
    %12 = arith.mulf %7, %11 : vector<32x1xf32>
    %cst_8 = arith.constant 3.125000e-02 : f32
    %13 = vector.broadcast %cst_8 : f32 to vector<32x1xf32>
    %14 = arith.mulf %10, %13 : vector<32x1xf32>
    %15 = arith.mulf %12, %12 : vector<32x1xf32>
    %16 = arith.subf %14, %15 : vector<32x1xf32>
    %c0_9 = arith.constant 0 : index
    %c0_10 = arith.constant 0 : index
    %17 = vector.load %arg5[%c0_9, %c0_10] : memref<32x10xf32, #tpu.memory_space<vmem>>, vector<32x1xf32>
    %c0_11 = arith.constant 0 : index
    %c1 = arith.constant 1 : index
    %18 = vector.load %arg5[%c0_11, %c1] : memref<32x10xf32, #tpu.memory_space<vmem>>, vector<32x1xf32>
    %cst_12 = arith.constant 9.99999974E-6 : f32
    %19 = vector.broadcast %cst_12 : f32 to vector<32x1xf32>
    %20 = arith.addf %16, %19 : vector<32x1xf32>
    %21 = math.rsqrt %20 : vector<32x1xf32>
    %22 = arith.mulf %17, %21 : vector<32x1xf32>
    %23 = vector.broadcast %22 : vector<32x1xf32> to vector<32x128xf32>
    %24 = arith.mulf %3, %23 : vector<32x128xf32>
    %25 = arith.mulf %12, %22 : vector<32x1xf32>
    %26 = arith.subf %18, %25 : vector<32x1xf32>
    %27 = vector.broadcast %26 : vector<32x1xf32> to vector<32x128xf32>
    %28 = arith.addf %24, %27 : vector<32x128xf32>
    %cst_13 = arith.constant 0.000000e+00 : f32
    %29 = vector.broadcast %cst_13 : f32 to vector<32x128xf32>
    %30 = arith.cmpf ogt, %28, %29 : vector<32x128xf32>
    %31 = math.exp %28 : vector<32x128xf32>
    %cst_14 = arith.constant 1.000000e+00 : f32
    %32 = vector.broadcast %cst_14 : f32 to vector<32x128xf32>
    %33 = arith.subf %31, %32 : vector<32x128xf32>
    %34 = arith.select %30, %28, %33 : vector<32x128xi1>, vector<32x128xf32>
    %35 = vector.broadcast %0 : vector<1x128xf32> to vector<32x128xf32>
    %36 = arith.mulf %34, %35 : vector<32x128xf32>
    %c1_i32 = arith.constant 1 : i32
    %37 = tpu.dynamic_rotate %36 by %c1_i32 dim 1 : vector<32x128xf32>, i32 -> vector<32x128xf32>
    %c0_15 = arith.constant 0 : index
    %c0_16 = arith.constant 0 : index
    %c0_17 = arith.constant 0 : index
    %38 = vector.load %arg4[%c0_15, %c0_16, %c0_17] : memref<12x32x32xf32, #tpu.memory_space<vmem>>, vector<1x32x32xf32>
    %39 = vector.shape_cast %38 : vector<1x32x32xf32> to vector<32x32xf32>
    %cst_18 = arith.constant dense<0.000000e+00> : vector<32x128xf32>
    %40 = tpu.matmul %39, %37, %cst_18 {dimension_numbers = #tpu.dot_dimension_numbers<[1], [0], [0], [1], [0, 0, 1, 1], [], []>} : vector<32x32xf32>, vector<32x128xf32>, vector<32x128xf32> -> vector<32x128xf32>
    %c1_19 = arith.constant 1 : index
    %c0_20 = arith.constant 0 : index
    %c0_21 = arith.constant 0 : index
    %41 = vector.load %arg4[%c1_19, %c0_20, %c0_21] : memref<12x32x32xf32, #tpu.memory_space<vmem>>, vector<1x32x32xf32>
    %42 = vector.shape_cast %41 : vector<1x32x32xf32> to vector<32x32xf32>
    %cst_22 = arith.constant dense<0.000000e+00> : vector<32x128xf32>
    %43 = tpu.matmul %42, %36, %cst_22 {dimension_numbers = #tpu.dot_dimension_numbers<[1], [0], [0], [1], [0, 0, 1, 1], [], []>} : vector<32x32xf32>, vector<32x128xf32>, vector<32x128xf32> -> vector<32x128xf32>
    %44 = arith.addf %40, %43 : vector<32x128xf32>
    %c127_i32 = arith.constant 127 : i32
    %45 = tpu.dynamic_rotate %36 by %c127_i32 dim 1 : vector<32x128xf32>, i32 -> vector<32x128xf32>
    %c2 = arith.constant 2 : index
    %c0_23 = arith.constant 0 : index
    %c0_24 = arith.constant 0 : index
    %46 = vector.load %arg4[%c2, %c0_23, %c0_24] : memref<12x32x32xf32, #tpu.memory_space<vmem>>, vector<1x32x32xf32>
    %47 = vector.shape_cast %46 : vector<1x32x32xf32> to vector<32x32xf32>
    %cst_25 = arith.constant dense<0.000000e+00> : vector<32x128xf32>
    %48 = tpu.matmul %47, %45, %cst_25 {dimension_numbers = #tpu.dot_dimension_numbers<[1], [0], [0], [1], [0, 0, 1, 1], [], []>} : vector<32x32xf32>, vector<32x128xf32>, vector<32x128xf32> -> vector<32x128xf32>
    %49 = arith.addf %44, %48 : vector<32x128xf32>
    %50 = vector.broadcast %0 : vector<1x128xf32> to vector<32x128xf32>
    %51 = arith.mulf %49, %50 : vector<32x128xf32>
    %cst_26 = arith.constant dense<0.000000e+00> : vector<32xf32>
    %52 = vector.multi_reduction <add>, %51, %cst_26 [1] : vector<32x128xf32> to vector<32xf32>
    %53 = vector.shape_cast %52 : vector<32xf32> to vector<32x1xf32>
    %54 = arith.mulf %51, %49 : vector<32x128xf32>
    %cst_27 = arith.constant dense<0.000000e+00> : vector<32xf32>
    %55 = vector.multi_reduction <add>, %54, %cst_27 [1] : vector<32x128xf32> to vector<32xf32>
    %56 = vector.shape_cast %55 : vector<32xf32> to vector<32x1xf32>
    %cst_28 = arith.constant 3.125000e-02 : f32
    %57 = vector.broadcast %cst_28 : f32 to vector<32x1xf32>
    %58 = arith.mulf %53, %57 : vector<32x1xf32>
    %cst_29 = arith.constant 3.125000e-02 : f32
    %59 = vector.broadcast %cst_29 : f32 to vector<32x1xf32>
    %60 = arith.mulf %56, %59 : vector<32x1xf32>
    %61 = arith.mulf %58, %58 : vector<32x1xf32>
    %62 = arith.subf %60, %61 : vector<32x1xf32>
    %c0_30 = arith.constant 0 : index
    %c2_31 = arith.constant 2 : index
    %63 = vector.load %arg5[%c0_30, %c2_31] : memref<32x10xf32, #tpu.memory_space<vmem>>, vector<32x1xf32>
    %c0_32 = arith.constant 0 : index
    %c3 = arith.constant 3 : index
    %64 = vector.load %arg5[%c0_32, %c3] : memref<32x10xf32, #tpu.memory_space<vmem>>, vector<32x1xf32>
    %cst_33 = arith.constant 9.99999974E-6 : f32
    %65 = vector.broadcast %cst_33 : f32 to vector<32x1xf32>
    %66 = arith.addf %62, %65 : vector<32x1xf32>
    %67 = math.rsqrt %66 : vector<32x1xf32>
    %68 = arith.mulf %63, %67 : vector<32x1xf32>
    %69 = vector.broadcast %68 : vector<32x1xf32> to vector<32x128xf32>
    %70 = arith.mulf %49, %69 : vector<32x128xf32>
    %71 = arith.mulf %58, %68 : vector<32x1xf32>
    %72 = arith.subf %64, %71 : vector<32x1xf32>
    %73 = vector.broadcast %72 : vector<32x1xf32> to vector<32x128xf32>
    %74 = arith.addf %70, %73 : vector<32x128xf32>
    %cst_34 = arith.constant 0.000000e+00 : f32
    %75 = vector.broadcast %cst_34 : f32 to vector<32x128xf32>
    %76 = arith.cmpf ogt, %74, %75 : vector<32x128xf32>
    %77 = math.exp %74 : vector<32x128xf32>
    %cst_35 = arith.constant 1.000000e+00 : f32
    %78 = vector.broadcast %cst_35 : f32 to vector<32x128xf32>
    %79 = arith.subf %77, %78 : vector<32x128xf32>
    %80 = arith.select %76, %74, %79 : vector<32x128xi1>, vector<32x128xf32>
    %81 = vector.broadcast %0 : vector<1x128xf32> to vector<32x128xf32>
    %82 = arith.mulf %80, %81 : vector<32x128xf32>
    %c1_i32_36 = arith.constant 1 : i32
    %83 = tpu.dynamic_rotate %82 by %c1_i32_36 dim 1 : vector<32x128xf32>, i32 -> vector<32x128xf32>
    %c3_37 = arith.constant 3 : index
    %c0_38 = arith.constant 0 : index
    %c0_39 = arith.constant 0 : index
    %84 = vector.load %arg4[%c3_37, %c0_38, %c0_39] : memref<12x32x32xf32, #tpu.memory_space<vmem>>, vector<1x32x32xf32>
    %85 = vector.shape_cast %84 : vector<1x32x32xf32> to vector<32x32xf32>
    %cst_40 = arith.constant dense<0.000000e+00> : vector<32x128xf32>
    %86 = tpu.matmul %85, %83, %cst_40 {dimension_numbers = #tpu.dot_dimension_numbers<[1], [0], [0], [1], [0, 0, 1, 1], [], []>} : vector<32x32xf32>, vector<32x128xf32>, vector<32x128xf32> -> vector<32x128xf32>
    %c4 = arith.constant 4 : index
    %c0_41 = arith.constant 0 : index
    %c0_42 = arith.constant 0 : index
    %87 = vector.load %arg4[%c4, %c0_41, %c0_42] : memref<12x32x32xf32, #tpu.memory_space<vmem>>, vector<1x32x32xf32>
    %88 = vector.shape_cast %87 : vector<1x32x32xf32> to vector<32x32xf32>
    %cst_43 = arith.constant dense<0.000000e+00> : vector<32x128xf32>
    %89 = tpu.matmul %88, %82, %cst_43 {dimension_numbers = #tpu.dot_dimension_numbers<[1], [0], [0], [1], [0, 0, 1, 1], [], []>} : vector<32x32xf32>, vector<32x128xf32>, vector<32x128xf32> -> vector<32x128xf32>
    %90 = arith.addf %86, %89 : vector<32x128xf32>
    %c127_i32_44 = arith.constant 127 : i32
    %91 = tpu.dynamic_rotate %82 by %c127_i32_44 dim 1 : vector<32x128xf32>, i32 -> vector<32x128xf32>
    %c5 = arith.constant 5 : index
    %c0_45 = arith.constant 0 : index
    %c0_46 = arith.constant 0 : index
    %92 = vector.load %arg4[%c5, %c0_45, %c0_46] : memref<12x32x32xf32, #tpu.memory_space<vmem>>, vector<1x32x32xf32>
    %93 = vector.shape_cast %92 : vector<1x32x32xf32> to vector<32x32xf32>
    %cst_47 = arith.constant dense<0.000000e+00> : vector<32x128xf32>
    %94 = tpu.matmul %93, %91, %cst_47 {dimension_numbers = #tpu.dot_dimension_numbers<[1], [0], [0], [1], [0, 0, 1, 1], [], []>} : vector<32x32xf32>, vector<32x128xf32>, vector<32x128xf32> -> vector<32x128xf32>
    %95 = arith.addf %90, %94 : vector<32x128xf32>
    %96 = vector.broadcast %0 : vector<1x128xf32> to vector<32x128xf32>
    %97 = arith.mulf %95, %96 : vector<32x128xf32>
    %cst_48 = arith.constant dense<0.000000e+00> : vector<32xf32>
    %98 = vector.multi_reduction <add>, %97, %cst_48 [1] : vector<32x128xf32> to vector<32xf32>
    %99 = vector.shape_cast %98 : vector<32xf32> to vector<32x1xf32>
    %100 = arith.mulf %97, %95 : vector<32x128xf32>
    %cst_49 = arith.constant dense<0.000000e+00> : vector<32xf32>
    %101 = vector.multi_reduction <add>, %100, %cst_49 [1] : vector<32x128xf32> to vector<32xf32>
    %102 = vector.shape_cast %101 : vector<32xf32> to vector<32x1xf32>
    %cst_50 = arith.constant 3.125000e-02 : f32
    %103 = vector.broadcast %cst_50 : f32 to vector<32x1xf32>
    %104 = arith.mulf %99, %103 : vector<32x1xf32>
    %cst_51 = arith.constant 3.125000e-02 : f32
    %105 = vector.broadcast %cst_51 : f32 to vector<32x1xf32>
    %106 = arith.mulf %102, %105 : vector<32x1xf32>
    %107 = arith.mulf %104, %104 : vector<32x1xf32>
    %108 = arith.subf %106, %107 : vector<32x1xf32>
    %c0_52 = arith.constant 0 : index
    %c4_53 = arith.constant 4 : index
    %109 = vector.load %arg5[%c0_52, %c4_53] : memref<32x10xf32, #tpu.memory_space<vmem>>, vector<32x1xf32>
    %c0_54 = arith.constant 0 : index
    %c5_55 = arith.constant 5 : index
    %110 = vector.load %arg5[%c0_54, %c5_55] : memref<32x10xf32, #tpu.memory_space<vmem>>, vector<32x1xf32>
    %cst_56 = arith.constant 9.99999974E-6 : f32
    %111 = vector.broadcast %cst_56 : f32 to vector<32x1xf32>
    %112 = arith.addf %108, %111 : vector<32x1xf32>
    %113 = math.rsqrt %112 : vector<32x1xf32>
    %114 = arith.mulf %109, %113 : vector<32x1xf32>
    %115 = vector.broadcast %114 : vector<32x1xf32> to vector<32x128xf32>
    %116 = arith.mulf %95, %115 : vector<32x128xf32>
    %117 = arith.mulf %104, %114 : vector<32x1xf32>
    %118 = arith.subf %110, %117 : vector<32x1xf32>
    %119 = vector.broadcast %118 : vector<32x1xf32> to vector<32x128xf32>
    %120 = arith.addf %116, %119 : vector<32x128xf32>
    %121 = arith.addf %120, %36 : vector<32x128xf32>
    %cst_57 = arith.constant 0.000000e+00 : f32
    %122 = vector.broadcast %cst_57 : f32 to vector<32x128xf32>
    %123 = arith.cmpf ogt, %121, %122 : vector<32x128xf32>
    %124 = math.exp %121 : vector<32x128xf32>
    %cst_58 = arith.constant 1.000000e+00 : f32
    %125 = vector.broadcast %cst_58 : f32 to vector<32x128xf32>
    %126 = arith.subf %124, %125 : vector<32x128xf32>
    %127 = arith.select %123, %121, %126 : vector<32x128xi1>, vector<32x128xf32>
    %128 = vector.broadcast %0 : vector<1x128xf32> to vector<32x128xf32>
    %129 = arith.mulf %127, %128 : vector<32x128xf32>
    %c1_i32_59 = arith.constant 1 : i32
    %130 = tpu.dynamic_rotate %129 by %c1_i32_59 dim 1 : vector<32x128xf32>, i32 -> vector<32x128xf32>
    %c6 = arith.constant 6 : index
    %c0_60 = arith.constant 0 : index
    %c0_61 = arith.constant 0 : index
    %131 = vector.load %arg4[%c6, %c0_60, %c0_61] : memref<12x32x32xf32, #tpu.memory_space<vmem>>, vector<1x32x32xf32>
    %132 = vector.shape_cast %131 : vector<1x32x32xf32> to vector<32x32xf32>
    %cst_62 = arith.constant dense<0.000000e+00> : vector<32x128xf32>
    %133 = tpu.matmul %132, %130, %cst_62 {dimension_numbers = #tpu.dot_dimension_numbers<[1], [0], [0], [1], [0, 0, 1, 1], [], []>} : vector<32x32xf32>, vector<32x128xf32>, vector<32x128xf32> -> vector<32x128xf32>
    %c7 = arith.constant 7 : index
    %c0_63 = arith.constant 0 : index
    %c0_64 = arith.constant 0 : index
    %134 = vector.load %arg4[%c7, %c0_63, %c0_64] : memref<12x32x32xf32, #tpu.memory_space<vmem>>, vector<1x32x32xf32>
    %135 = vector.shape_cast %134 : vector<1x32x32xf32> to vector<32x32xf32>
    %cst_65 = arith.constant dense<0.000000e+00> : vector<32x128xf32>
    %136 = tpu.matmul %135, %129, %cst_65 {dimension_numbers = #tpu.dot_dimension_numbers<[1], [0], [0], [1], [0, 0, 1, 1], [], []>} : vector<32x32xf32>, vector<32x128xf32>, vector<32x128xf32> -> vector<32x128xf32>
    %137 = arith.addf %133, %136 : vector<32x128xf32>
    %c127_i32_66 = arith.constant 127 : i32
    %138 = tpu.dynamic_rotate %129 by %c127_i32_66 dim 1 : vector<32x128xf32>, i32 -> vector<32x128xf32>
    %c8 = arith.constant 8 : index
    %c0_67 = arith.constant 0 : index
    %c0_68 = arith.constant 0 : index
    %139 = vector.load %arg4[%c8, %c0_67, %c0_68] : memref<12x32x32xf32, #tpu.memory_space<vmem>>, vector<1x32x32xf32>
    %140 = vector.shape_cast %139 : vector<1x32x32xf32> to vector<32x32xf32>
    %cst_69 = arith.constant dense<0.000000e+00> : vector<32x128xf32>
    %141 = tpu.matmul %140, %138, %cst_69 {dimension_numbers = #tpu.dot_dimension_numbers<[1], [0], [0], [1], [0, 0, 1, 1], [], []>} : vector<32x32xf32>, vector<32x128xf32>, vector<32x128xf32> -> vector<32x128xf32>
    %142 = arith.addf %137, %141 : vector<32x128xf32>
    %143 = vector.broadcast %0 : vector<1x128xf32> to vector<32x128xf32>
    %144 = arith.mulf %142, %143 : vector<32x128xf32>
    %cst_70 = arith.constant dense<0.000000e+00> : vector<32xf32>
    %145 = vector.multi_reduction <add>, %144, %cst_70 [1] : vector<32x128xf32> to vector<32xf32>
    %146 = vector.shape_cast %145 : vector<32xf32> to vector<32x1xf32>
    %147 = arith.mulf %144, %142 : vector<32x128xf32>
    %cst_71 = arith.constant dense<0.000000e+00> : vector<32xf32>
    %148 = vector.multi_reduction <add>, %147, %cst_71 [1] : vector<32x128xf32> to vector<32xf32>
    %149 = vector.shape_cast %148 : vector<32xf32> to vector<32x1xf32>
    %cst_72 = arith.constant 3.125000e-02 : f32
    %150 = vector.broadcast %cst_72 : f32 to vector<32x1xf32>
    %151 = arith.mulf %146, %150 : vector<32x1xf32>
    %cst_73 = arith.constant 3.125000e-02 : f32
    %152 = vector.broadcast %cst_73 : f32 to vector<32x1xf32>
    %153 = arith.mulf %149, %152 : vector<32x1xf32>
    %154 = arith.mulf %151, %151 : vector<32x1xf32>
    %155 = arith.subf %153, %154 : vector<32x1xf32>
    %c0_74 = arith.constant 0 : index
    %c6_75 = arith.constant 6 : index
    %156 = vector.load %arg5[%c0_74, %c6_75] : memref<32x10xf32, #tpu.memory_space<vmem>>, vector<32x1xf32>
    %c0_76 = arith.constant 0 : index
    %c7_77 = arith.constant 7 : index
    %157 = vector.load %arg5[%c0_76, %c7_77] : memref<32x10xf32, #tpu.memory_space<vmem>>, vector<32x1xf32>
    %cst_78 = arith.constant 9.99999974E-6 : f32
    %158 = vector.broadcast %cst_78 : f32 to vector<32x1xf32>
    %159 = arith.addf %155, %158 : vector<32x1xf32>
    %160 = math.rsqrt %159 : vector<32x1xf32>
    %161 = arith.mulf %156, %160 : vector<32x1xf32>
    %162 = vector.broadcast %161 : vector<32x1xf32> to vector<32x128xf32>
    %163 = arith.mulf %142, %162 : vector<32x128xf32>
    %164 = arith.mulf %151, %161 : vector<32x1xf32>
    %165 = arith.subf %157, %164 : vector<32x1xf32>
    %166 = vector.broadcast %165 : vector<32x1xf32> to vector<32x128xf32>
    %167 = arith.addf %163, %166 : vector<32x128xf32>
    %cst_79 = arith.constant 0.000000e+00 : f32
    %168 = vector.broadcast %cst_79 : f32 to vector<32x128xf32>
    %169 = arith.cmpf ogt, %167, %168 : vector<32x128xf32>
    %170 = math.exp %167 : vector<32x128xf32>
    %cst_80 = arith.constant 1.000000e+00 : f32
    %171 = vector.broadcast %cst_80 : f32 to vector<32x128xf32>
    %172 = arith.subf %170, %171 : vector<32x128xf32>
    %173 = arith.select %169, %167, %172 : vector<32x128xi1>, vector<32x128xf32>
    %174 = vector.broadcast %0 : vector<1x128xf32> to vector<32x128xf32>
    %175 = arith.mulf %173, %174 : vector<32x128xf32>
    %c1_i32_81 = arith.constant 1 : i32
    %176 = tpu.dynamic_rotate %175 by %c1_i32_81 dim 1 : vector<32x128xf32>, i32 -> vector<32x128xf32>
    %c9 = arith.constant 9 : index
    %c0_82 = arith.constant 0 : index
    %c0_83 = arith.constant 0 : index
    %177 = vector.load %arg4[%c9, %c0_82, %c0_83] : memref<12x32x32xf32, #tpu.memory_space<vmem>>, vector<1x32x32xf32>
    %178 = vector.shape_cast %177 : vector<1x32x32xf32> to vector<32x32xf32>
    %cst_84 = arith.constant dense<0.000000e+00> : vector<32x128xf32>
    %179 = tpu.matmul %178, %176, %cst_84 {dimension_numbers = #tpu.dot_dimension_numbers<[1], [0], [0], [1], [0, 0, 1, 1], [], []>} : vector<32x32xf32>, vector<32x128xf32>, vector<32x128xf32> -> vector<32x128xf32>
    %c10 = arith.constant 10 : index
    %c0_85 = arith.constant 0 : index
    %c0_86 = arith.constant 0 : index
    %180 = vector.load %arg4[%c10, %c0_85, %c0_86] : memref<12x32x32xf32, #tpu.memory_space<vmem>>, vector<1x32x32xf32>
    %181 = vector.shape_cast %180 : vector<1x32x32xf32> to vector<32x32xf32>
    %cst_87 = arith.constant dense<0.000000e+00> : vector<32x128xf32>
    %182 = tpu.matmul %181, %175, %cst_87 {dimension_numbers = #tpu.dot_dimension_numbers<[1], [0], [0], [1], [0, 0, 1, 1], [], []>} : vector<32x32xf32>, vector<32x128xf32>, vector<32x128xf32> -> vector<32x128xf32>
    %183 = arith.addf %179, %182 : vector<32x128xf32>
    %c127_i32_88 = arith.constant 127 : i32
    %184 = tpu.dynamic_rotate %175 by %c127_i32_88 dim 1 : vector<32x128xf32>, i32 -> vector<32x128xf32>
    %c11 = arith.constant 11 : index
    %c0_89 = arith.constant 0 : index
    %c0_90 = arith.constant 0 : index
    %185 = vector.load %arg4[%c11, %c0_89, %c0_90] : memref<12x32x32xf32, #tpu.memory_space<vmem>>, vector<1x32x32xf32>
    %186 = vector.shape_cast %185 : vector<1x32x32xf32> to vector<32x32xf32>
    %cst_91 = arith.constant dense<0.000000e+00> : vector<32x128xf32>
    %187 = tpu.matmul %186, %184, %cst_91 {dimension_numbers = #tpu.dot_dimension_numbers<[1], [0], [0], [1], [0, 0, 1, 1], [], []>} : vector<32x32xf32>, vector<32x128xf32>, vector<32x128xf32> -> vector<32x128xf32>
    %188 = arith.addf %183, %187 : vector<32x128xf32>
    %189 = vector.broadcast %0 : vector<1x128xf32> to vector<32x128xf32>
    %190 = arith.mulf %188, %189 : vector<32x128xf32>
    %cst_92 = arith.constant dense<0.000000e+00> : vector<32xf32>
    %191 = vector.multi_reduction <add>, %190, %cst_92 [1] : vector<32x128xf32> to vector<32xf32>
    %192 = vector.shape_cast %191 : vector<32xf32> to vector<32x1xf32>
    %193 = arith.mulf %190, %188 : vector<32x128xf32>
    %cst_93 = arith.constant dense<0.000000e+00> : vector<32xf32>
    %194 = vector.multi_reduction <add>, %193, %cst_93 [1] : vector<32x128xf32> to vector<32xf32>
    %195 = vector.shape_cast %194 : vector<32xf32> to vector<32x1xf32>
    %cst_94 = arith.constant 3.125000e-02 : f32
    %196 = vector.broadcast %cst_94 : f32 to vector<32x1xf32>
    %197 = arith.mulf %192, %196 : vector<32x1xf32>
    %cst_95 = arith.constant 3.125000e-02 : f32
    %198 = vector.broadcast %cst_95 : f32 to vector<32x1xf32>
    %199 = arith.mulf %195, %198 : vector<32x1xf32>
    %200 = arith.mulf %197, %197 : vector<32x1xf32>
    %201 = arith.subf %199, %200 : vector<32x1xf32>
    %c0_96 = arith.constant 0 : index
    %c8_97 = arith.constant 8 : index
    %202 = vector.load %arg5[%c0_96, %c8_97] : memref<32x10xf32, #tpu.memory_space<vmem>>, vector<32x1xf32>
    %c0_98 = arith.constant 0 : index
    %c9_99 = arith.constant 9 : index
    %203 = vector.load %arg5[%c0_98, %c9_99] : memref<32x10xf32, #tpu.memory_space<vmem>>, vector<32x1xf32>
    %cst_100 = arith.constant 9.99999974E-6 : f32
    %204 = vector.broadcast %cst_100 : f32 to vector<32x1xf32>
    %205 = arith.addf %201, %204 : vector<32x1xf32>
    %206 = math.rsqrt %205 : vector<32x1xf32>
    %207 = arith.mulf %202, %206 : vector<32x1xf32>
    %208 = vector.broadcast %207 : vector<32x1xf32> to vector<32x128xf32>
    %209 = arith.mulf %188, %208 : vector<32x128xf32>
    %210 = arith.mulf %197, %207 : vector<32x1xf32>
    %211 = arith.subf %203, %210 : vector<32x1xf32>
    %212 = vector.broadcast %211 : vector<32x1xf32> to vector<32x128xf32>
    %213 = arith.addf %209, %212 : vector<32x128xf32>
    %214 = arith.addf %213, %129 : vector<32x128xf32>
    %cst_101 = arith.constant 0.000000e+00 : f32
    %215 = vector.broadcast %cst_101 : f32 to vector<32x128xf32>
    %216 = arith.cmpf ogt, %214, %215 : vector<32x128xf32>
    %217 = math.exp %214 : vector<32x128xf32>
    %cst_102 = arith.constant 1.000000e+00 : f32
    %218 = vector.broadcast %cst_102 : f32 to vector<32x128xf32>
    %219 = arith.subf %217, %218 : vector<32x128xf32>
    %220 = arith.select %216, %214, %219 : vector<32x128xi1>, vector<32x128xf32>
    %221 = vector.broadcast %0 : vector<1x128xf32> to vector<32x128xf32>
    %222 = arith.mulf %220, %221 : vector<32x128xf32>
    %c0_103 = arith.constant 0 : index
    %c0_104 = arith.constant 0 : index
    %223 = vector.load %arg6[%c0_103, %c0_104] : memref<32x128xf32, #tpu.memory_space<vmem>>, vector<32x128xf32>
    tpu.vector_store %arg6[%c0_103, %c0_104], %222 {strides = array<i32>} : memref<32x128xf32, #tpu.memory_space<vmem>>, vector<32x128xf32>,
    return
  }
  func.func @transform_0(%arg0: i32) -> (i32, i32) {
    %c0_i32 = arith.constant 0 : i32
    %c0_i32_0 = arith.constant 0 : i32
    %c0_i32_1 = arith.constant 0 : i32
    return %c0_i32, %c0_i32_0 : i32, i32
  }
  func.func @transform_1(%arg0: i32) -> (i32, i32) {
    %c0_i32 = arith.constant 0 : i32
    %c0_i32_0 = arith.constant 0 : i32
    %c0_i32_1 = arith.constant 0 : i32
    return %c0_i32, %c0_i32_0 : i32, i32
  }
  func.func @transform_2(%arg0: i32) -> (i32, i32) {
    %c0_i32 = arith.constant 0 : i32
    %c0_i32_0 = arith.constant 0 : i32
    %c0_i32_1 = arith.constant 0 : i32
    return %c0_i32, %c0_i32_0 : i32, i32
  }
  func.func @transform_3(%arg0: i32) -> (i32, i32, i32) {
    %c0_i32 = arith.constant 0 : i32
    %c0_i32_0 = arith.constant 0 : i32
    %c0_i32_1 = arith.constant 0 : i32
    %c0_i32_2 = arith.constant 0 : i32
    return %c0_i32, %c0_i32_0, %c0_i32_1 : i32, i32, i32
  }
  func.func @transform_4(%arg0: i32) -> (i32, i32) {
    %c0_i32 = arith.constant 0 : i32
    %c0_i32_0 = arith.constant 0 : i32
    %c0_i32_1 = arith.constant 0 : i32
    return %c0_i32, %c0_i32_0 : i32, i32
  }
  func.func @transform_5(%arg0: i32) -> (i32, i32) {
    %c0_i32 = arith.constant 0 : i32
    %c0_i32_0 = arith.constant 0 : i32
    %c0_i32_1 = arith.constant 0 : i32
    return %c0_i32, %c0_i32_0 : i32, i32
  }
}

</mosaic_0001>

<llo_original>
// kernel: tpu_custom_call.1
$region0: #{tpu_custom_call.1}
  #allocation0 [shape = 'u32[]', space=smem, size = 0x4, offset = 0x4, fixed_abs, tag = 'smem constant byte address 0x4 - core index']
  #allocation1 [shape = 'u32[144,128]{1,0:T(1,128)}', space=vmem, size = 0x12000, scoped, tag = 'internal scratch']
  %s0 = inlined_call_operand.vmem [shape: f32[8,128], index: 0, kind: input, shape index: {}]
  %s1 = inlined_call_operand.vmem [shape: f32[1,128], index: 1, kind: input, shape index: {}]
  %s2 = inlined_call_operand.vmem [shape: f32[32,8], index: 2, kind: input, shape index: {}]
  %s3 = inlined_call_operand.hbm [shape: f32[12,32,32], index: 3, kind: input, shape index: {}]
  %s4 = inlined_call_operand.vmem [shape: f32[32,10], index: 4, kind: input, shape index: {}]
  %s5 = inlined_call_operand.hbm [shape: f32[32,128], index: 5, kind: output, shape index: {}]
  %s6 = sld [smem:[#allocation0]]
  $region34: #{tpu_custom_call.1} parent=0
    _
  %s8 = ssub.s32 1, %s6
  %s9 = scalar_select 0, %s8, %s6
  $region1: #{tpu_custom_call.1} parent=0
    #allocation2 [shape = 'u8[196608]{0}', space=vmem, size = 0x30000, scoped, tag = 'input window, operand 3, single buffered']
    #allocation3 [shape = 's32[1]{0}', space=sflag, size = 0x4, scoped, tag = 'scoped memory for tpu_custom_call.1']
    #allocation4 [shape = 's32[1]{0}', space=sflag, size = 0x4, scoped, tag = 'scoped memory for tpu_custom_call.1']
    #allocation5 [shape = 'u8[16384]{0}', space=vmem, size = 0x4000, scoped, tag = 'output window, operand 0, single buffered']
    %10 = vsyncpa [#allocation3], 0
    %11 = vsyncpa [#allocation4], 0
    // Predicated region
    $region2: #{tpu_custom_call.1} parent=1 // pred_check
      _
    $region3: #{tpu_custom_call.1} parent=1 // pred_check_branch
      %13 = sbr.rel (0) target = $region5
    $region4: #{tpu_custom_call.1} parent=1 // pred_region
      _
    $region5: #{tpu_custom_call.1} parent=1 // pred_fallthru
      _
    // Predicated region
    $region6: #{tpu_custom_call.1} parent=1 // pred_check
      _
    $region7: #{tpu_custom_call.1} parent=1 // pred_check_branch
      %15 = sbr.rel (0) target = $region9
    $region8: #{tpu_custom_call.1} parent=1 // pred_region
      _
    $region9: #{tpu_custom_call.1} parent=1 // pred_fallthru
      _
    // Predicated region
    $region10: #{tpu_custom_call.1} parent=1 // pred_check
      _
    $region11: #{tpu_custom_call.1} parent=1 // pred_check_branch
      %17 = sbr.rel (0) target = $region13
    $region12: #{tpu_custom_call.1} parent=1 // pred_region
      _
    $region13: #{tpu_custom_call.1} parent=1 // pred_fallthru
      _
    // Predicated region
    $region14: #{tpu_custom_call.1} parent=1 // pred_check
      _
    $region15: #{tpu_custom_call.1} parent=1 // pred_check_branch
      %19 = sbr.rel (0) target = $region17
    $region16: #{tpu_custom_call.1} parent=1 // pred_region
      %s21 = ssub.s32 6144, 6144
      %22 = vsyncadd [#allocation3], %s21
      %s23 = sshll.u32 [#allocation2], 4
      %s24 = int_to_ptr.vmem [resolvable:$true] %s23
      %29 = dma.hbm_to_vmem [thread:$0]  %s3, 6144, %s24, [#allocation3], 128, 128, 8
    $region17: #{tpu_custom_call.1} parent=1 // pred_fallthru
      _
    // Predicated region
    $region18: #{tpu_custom_call.1} parent=1 // pred_check
      _
    $region19: #{tpu_custom_call.1} parent=1 // pred_check_branch
      %31 = sbr.rel (0) target = $region21
    $region20: #{tpu_custom_call.1} parent=1 // pred_region
      _
    $region21: #{tpu_custom_call.1} parent=1 // pred_fallthru
      _
    // Predicated region
    $region22: #{tpu_custom_call.1} parent=1 // pred_check
      _
    $region23: #{tpu_custom_call.1} parent=1 // pred_check_branch
      %33 = sbr.rel (0) target = $region25
    $region24: #{tpu_custom_call.1} parent=1 // pred_region
      %34 = dma.done [#allocation3], 6144
    $region25: #{tpu_custom_call.1} parent=1 // pred_fallthru
      _
    %v35 = vld [vmem:[%s1] sm:$0x1]
    %v36 = vld [vmem:[%s2] sm:$0xff]
    %v37 = vld [vmem:[%s2 + $0x8] sm:$0xff]
    %v38 = vld [vmem:[%s2 + $0x10] sm:$0xff]
    %v39 = vld [vmem:[%s2 + $0x18] sm:$0xff]
    %v40 = vld [vmem:[%s0] sm:$0xff]
    %vm41 = vcmask 64512
    %v43 = vsel %vm41, %v36, 0
    %v46 = vsel %vm41, %v37, 0
    %v49 = vsel %vm41, %v38, 0
    %v52 = vsel %vm41, %v39, 0
    %54 = vmatprep.subr.mxu0 0.0
    %55 = vmatpush1.msra.mxu0 %v40
    %56 = vmatprep.subr.mxu0 0.0
    %57 = vmatpush1.msra.mxu0 0.0
    %58 = vmatprep.subr.mxu0 0.0
    %59 = vmatpush1.msra.mxu0 0.0
    %60 = vmatprep.subr.mxu0 0.0
    %61 = vmatpush1.msra.mxu0 0.0
    %62 = vmatprep.subr.mxu0 0.0
    %63 = vmatpush1.msra.mxu0 0.0
    %64 = vmatprep.subr.mxu0 0.0
    %65 = vmatpush1.msra.mxu0 0.0
    %66 = vmatprep.subr.mxu0 0.0
    %67 = vmatpush1.msra.mxu0 0.0
    %68 = vmatprep.subr.mxu0 0.0
    %69 = vmatpush1.msra.mxu0 0.0
    %70 = vmatprep.subr.mxu0 0.0
    %71 = vmatpush1.msra.mxu0 0.0
    %72 = vmatprep.subr.mxu0 0.0
    %73 = vmatpush1.msra.mxu0 0.0
    %74 = vmatprep.subr.mxu0 0.0
    %75 = vmatpush1.msra.mxu0 0.0
    %76 = vmatprep.subr.mxu0 0.0
    %77 = vmatpush1.msra.mxu0 0.0
    %78 = vmatprep.subr.mxu0 0.0
    %79 = vmatpush1.msra.mxu0 0.0
    %80 = vmatprep.subr.mxu0 0.0
    %81 = vmatpush1.msra.mxu0 0.0
    %82 = vmatprep.subr.mxu0 0.0
    %83 = vmatpush1.msra.mxu0 0.0
    %84 = vmatprep.subr.mxu0 0.0
    %85 = vmatpush1.msra.mxu0 0.0
    %86 = vmatprep.subr.mxu0 0.0
    %87 = vmatpush1.msra.mxu0 0.0
    %88 = vmatprep.subr.mxu0 0.0
    %89 = vmatpush1.msra.mxu0 0.0
    %90 = vmatprep.subr.mxu0 0.0
    %91 = vmatpush1.msra.mxu0 0.0
    %92 = vmatprep.subr.mxu0 0.0
    %93 = vmatpush1.msra.mxu0 0.0
    %94 = vmatprep.subr.mxu0 0.0
    %95 = vmatpush1.msra.mxu0 0.0
    %96 = vmatprep.subr.mxu0 0.0
    %97 = vmatpush1.msra.mxu0 0.0
    %98 = vmatprep.subr.mxu0 0.0
    %99 = vmatpush1.msra.mxu0 0.0
    %100 = vmatprep.subr.mxu0 0.0
    %101 = vmatpush1.msra.mxu0 0.0
    %102 = vmatprep.subr.mxu0 0.0
    %103 = vmatpush1.msra.mxu0 0.0
    %104 = vmatprep.subr.mxu0 0.0
    %105 = vmatpush1.msra.mxu0 0.0
    %106 = vmatprep.subr.mxu0 0.0
    %107 = vmatpush1.msra.mxu0 0.0
    %108 = vmatprep.subr.mxu0 0.0
    %109 = vmatpush1.msra.mxu0 0.0
    %110 = vmatprep.subr.mxu0 0.0
    %111 = vmatpush1.msra.mxu0 0.0
    %112 = vmatprep.subr.mxu0 0.0
    %113 = vmatpush1.msra.mxu0 0.0
    %114 = vmatprep.subr.mxu0 0.0
    %115 = vmatpush1.msra.mxu0 0.0
    %116 = vmatprep.subr.mxu0 0.0
    %117 = vmatpush1.msra.mxu0 0.0
    %118 = vmatprep.mubr.f32.mxu0 0.0
    %119 = vmatmul.mubr.f32.gmra.mrb[0].mxu0 %v43
    %v120 = vpop.f32.mrb[0].mxu0
    %v121 = vadd.f32 0.0, %v120
    %v122 = vpop.f32.mrb[0].mxu0
    %123 = vmatprep.mubr.f32.mxu0 0.0
    %124 = vmatmul.mubr.f32.gmra.mrb[0].mxu0 %v46
    %v125 = vpop.f32.mrb[0].mxu0
    %v126 = vadd.f32 0.0, %v125
    %v127 = vpop.f32.mrb[0].mxu0
    %128 = vmatprep.mubr.f32.mxu0 0.0
    %129 = vmatmul.mubr.f32.gmra.mrb[0].mxu0 %v49
    %v130 = vpop.f32.mrb[0].mxu0
    %v131 = vadd.f32 0.0, %v130
    %v132 = vpop.f32.mrb[0].mxu0
    %133 = vmatprep.mubr.f32.mxu0 0.0
    %134 = vmatmul.mubr.f32.gmra.mrb[0].mxu0 %v52
    %v135 = vpop.f32.mrb[0].mxu0
    %v136 = vadd.f32 0.0, %v135
    %v137 = vpop.f32.mrb[0].mxu0
    %138 = vdwg.mxu0
    %v140 = vlaneseq
    %v141 = vshrl.u32 %v140, 7
    %v142 = vsub.s32 0, %v141
    %v143 = vrot.slane %v35, %v142
    %v145 = vmul.f32 %v121, %v143
    %v146 = vmul.f32 %v126, %v143
    %v147 = vmul.f32 %v131, %v143
    %v148 = vmul.f32 %v136, %v143
    %149 = vadd.xlane.f32.xlu0 %v145
    %v150 = vpop.xlane.xlu0 %149
    %151 = vadd.xlane.f32.xlu0 %v146
    %v152 = vpop.xlane.xlu0 %151
    %153 = vadd.xlane.f32.xlu0 %v147
    %v154 = vpop.xlane.xlu0 %153
    %155 = vadd.xlane.f32.xlu0 %v148
    %v156 = vpop.xlane.xlu0 %155
    %v157 = vmul.f32 %v145, %v121
    %v158 = vmul.f32 %v146, %v126
    %v159 = vmul.f32 %v147, %v131
    %v160 = vmul.f32 %v148, %v136
    %161 = vadd.xlane.f32.xlu0 %v157
    %v162 = vpop.xlane.xlu0 %161
    %163 = vadd.xlane.f32.xlu0 %v158
    %v164 = vpop.xlane.xlu0 %163
    %165 = vadd.xlane.f32.xlu0 %v159
    %v166 = vpop.xlane.xlu0 %165
    %167 = vadd.xlane.f32.xlu0 %v160
    %v168 = vpop.xlane.xlu0 %167
    %v169 = vmul.f32 %v150, 0.03125
    %v170 = vmul.f32 %v152, 0.03125
    %v171 = vmul.f32 %v154, 0.03125
    %v172 = vmul.f32 %v156, 0.03125
    %v173 = vmul.f32 %v162, 0.03125
    %v174 = vmul.f32 %v164, 0.03125
    %v175 = vmul.f32 %v166, 0.03125
    %v176 = vmul.f32 %v168, 0.03125
    %v177 = vmul.f32 %v169, %v169
    %v178 = vmul.f32 %v170, %v170
    %v179 = vmul.f32 %v171, %v171
    %v180 = vmul.f32 %v172, %v172
    %v181 = vsub.f32 %v173, %v177
    %v182 = vsub.f32 %v174, %v178
    %v183 = vsub.f32 %v175, %v179
    %v184 = vsub.f32 %v176, %v180
    %v185 = vld [vmem:[%s4] sm:$0xff]
    %v186 = vld [vmem:[%s4 + $0x8] sm:$0xff]
    %v187 = vld [vmem:[%s4 + $0x10] sm:$0xff]
    %v188 = vld [vmem:[%s4 + $0x18] sm:$0xff]
    %v189 = vadd.f32 %v181, 1e-05
    %v190 = vadd.f32 %v182, 1e-05
    %v191 = vadd.f32 %v183, 1e-05
    %v192 = vadd.f32 %v184, 1e-05
    %v193 = vrsqrt.pop %v189
    %v194 = vrsqrt.pop %v190
    %v195 = vrsqrt.pop %v191
    %v196 = vrsqrt.pop %v192
    %v197 = vmul.f32 %v185, %v193
    %v198 = vmul.f32 %v186, %v194
    %v199 = vmul.f32 %v187, %v195
    %v200 = vmul.f32 %v188, %v196
    %202 = vset.pattern.permute.xlu0 0
    %203 = vperm.xlu0 %202, %v197
    %v204 = vpop.permute.xlu0 %203
    %207 = vset.pattern.permute.xlu0 0
    %208 = vperm.xlu0 %207, %v198
    %v209 = vpop.permute.xlu0 %208
    %212 = vset.pattern.permute.xlu0 0
    %213 = vperm.xlu0 %212, %v199
    %v214 = vpop.permute.xlu0 %213
    %217 = vset.pattern.permute.xlu0 0
    %218 = vperm.xlu0 %217, %v200
    %v219 = vpop.permute.xlu0 %218
    %v221 = vmul.f32 %v121, %v204
    %v222 = vmul.f32 %v126, %v209
    %v223 = vmul.f32 %v131, %v214
    %v224 = vmul.f32 %v136, %v219
    %v225 = vmul.f32 %v169, %v197
    %v226 = vmul.f32 %v170, %v198
    %v227 = vmul.f32 %v171, %v199
    %v228 = vmul.f32 %v172, %v200
    %233 = vrot.lane.b32.xlu0 %v225, 1
    %v234 = vpop.permute.xlu0 %233
    %235 = vrot.lane.b32.xlu0 %v226, 1
    %v236 = vpop.permute.xlu0 %235
    %237 = vrot.lane.b32.xlu0 %v227, 1
    %v238 = vpop.permute.xlu0 %237
    %239 = vrot.lane.b32.xlu0 %v228, 1
    %v240 = vpop.permute.xlu0 %239
    %v245 = vsub.f32 %v185, %v234
    %v246 = vsub.f32 %v186, %v236
    %v247 = vsub.f32 %v187, %v238
    %v248 = vsub.f32 %v188, %v240
    %250 = vset.pattern.permute.xlu0 1
    %251 = vperm.xlu0 %250, %v245
    %v252 = vpop.permute.xlu0 %251
    %255 = vset.pattern.permute.xlu0 1
    %256 = vperm.xlu0 %255, %v246
    %v257 = vpop.permute.xlu0 %256
    %260 = vset.pattern.permute.xlu0 1
    %261 = vperm.xlu0 %260, %v247
    %v262 = vpop.permute.xlu0 %261
    %265 = vset.pattern.permute.xlu0 1
    %266 = vperm.xlu0 %265, %v248
    %v267 = vpop.permute.xlu0 %266
    %v269 = vadd.f32 %v221, %v252
    %v270 = vadd.f32 %v222, %v257
    %v271 = vadd.f32 %v223, %v262
    %v272 = vadd.f32 %v224, %v267
    %vm273 = vcmp.gt.f32.partialorder %v269, 0.0
    %vm274 = vcmp.gt.f32.partialorder %v270, 0.0
    %vm275 = vcmp.gt.f32.partialorder %v271, 0.0
    %vm276 = vcmp.gt.f32.partialorder %v272, 0.0
    %v277 = vmul.f32 %v269, 1.442695
    %v278 = vpow.pop %v277
    %v279 = vmul.f32 %v270, 1.442695
    %v280 = vpow.pop %v279
    %v281 = vmul.f32 %v271, 1.442695
    %v282 = vpow.pop %v281
    %v283 = vmul.f32 %v272, 1.442695
    %v284 = vpow.pop %v283
    %v285 = vsub.f32 %v278, 1.0
    %v286 = vsub.f32 %v280, 1.0
    %v287 = vsub.f32 %v282, 1.0
    %v288 = vsub.f32 %v284, 1.0
    %v289 = vsel %vm273, %v269, %v285
    %v290 = vsel %vm274, %v270, %v286
    %v291 = vsel %vm275, %v271, %v287
    %v292 = vsel %vm276, %v272, %v288
    %v293 = vmul.f32 %v289, %v143
    %v294 = vmul.f32 %v290, %v143
    %v295 = vmul.f32 %v291, %v143
    %v296 = vmul.f32 %v292, %v143
    %297 = vrot.lane.b32.xlu0 %v293, 1
    %v298 = vpop.permute.xlu0 %297
    %299 = vrot.lane.b32.xlu0 %v294, 1
    %v300 = vpop.permute.xlu0 %299
    %301 = vrot.lane.b32.xlu0 %v295, 1
    %v302 = vpop.permute.xlu0 %301
    %303 = vrot.lane.b32.xlu0 %v296, 1
    %v304 = vpop.permute.xlu0 %303
    %v305 = vld [vmem:[#allocation2] sm:$0xff]
    %v306 = vld [vmem:[#allocation2 + $0x8] sm:$0xff]
    %v307 = vld [vmem:[#allocation2 + $0x10] sm:$0xff]
    %v308 = vld [vmem:[#allocation2 + $0x18] sm:$0xff]
    %s309 = scalar_lea.vmem [#allocation2], 32
    %v310 = vld [vmem:[%s309] sm:$0xff]
    %v311 = vld [vmem:[%s309 + $0x8] sm:$0xff]
    %v312 = vld [vmem:[%s309 + $0x10] sm:$0xff]
    %v313 = vld [vmem:[%s309 + $0x18] sm:$0xff]
    %vm314 = vcmask 261120
    %v316 = vsel %vm314, %v310, 0
    %v319 = vsel %vm314, %v311, 0
    %v322 = vsel %vm314, %v312, 0
    %v325 = vsel %vm314, %v313, 0
    %327 = vmatprep.subr.mxu0 0.0
    %328 = vmatpush1.msra.mxu0 %v293
    %329 = vmatprep.subr.mxu0 0.0
    %330 = vmatpush1.msra.mxu0 %v294
    %331 = vmatprep.subr.mxu0 0.0
    %332 = vmatpush1.msra.mxu0 %v295
    %333 = vmatprep.subr.mxu0 0.0
    %334 = vmatpush1.msra.mxu0 %v296
    %335 = vmatprep.subr.mxu0 0.0
    %336 = vmatpush1.msra.mxu0 0.0
    %337 = vmatprep.subr.mxu0 0.0
    %338 = vmatpush1.msra.mxu0 0.0
    %339 = vmatprep.subr.mxu0 0.0
    %340 = vmatpush1.msra.mxu0 0.0
    %341 = vmatprep.subr.mxu0 0.0
    %342 = vmatpush1.msra.mxu0 0.0
    %343 = vmatprep.subr.mxu0 0.0
    %344 = vmatpush1.msra.mxu0 0.0
    %345 = vmatprep.subr.mxu0 0.0
    %346 = vmatpush1.msra.mxu0 0.0
    %347 = vmatprep.subr.mxu0 0.0
    %348 = vmatpush1.msra.mxu0 0.0
    %349 = vmatprep.subr.mxu0 0.0
    %350 = vmatpush1.msra.mxu0 0.0
    %351 = vmatprep.subr.mxu0 0.0
    %352 = vmatpush1.msra.mxu0 0.0
    %353 = vmatprep.subr.mxu0 0.0
    %354 = vmatpush1.msra.mxu0 0.0
    %355 = vmatprep.subr.mxu0 0.0
    %356 = vmatpush1.msra.mxu0 0.0
    %357 = vmatprep.subr.mxu0 0.0
    %358 = vmatpush1.msra.mxu0 0.0
    %359 = vmatprep.subr.mxu0 0.0
    %360 = vmatpush1.msra.mxu0 0.0
    %361 = vmatprep.subr.mxu0 0.0
    %362 = vmatpush1.msra.mxu0 0.0
    %363 = vmatprep.subr.mxu0 0.0
    %364 = vmatpush1.msra.mxu0 0.0
    %365 = vmatprep.subr.mxu0 0.0
    %366 = vmatpush1.msra.mxu0 0.0
    %367 = vmatprep.subr.mxu0 0.0
    %368 = vmatpush1.msra.mxu0 0.0
    %369 = vmatprep.subr.mxu0 0.0
    %370 = vmatpush1.msra.mxu0 0.0
    %371 = vmatprep.subr.mxu0 0.0
    %372 = vmatpush1.msra.mxu0 0.0
    %373 = vmatprep.subr.mxu0 0.0
    %374 = vmatpush1.msra.mxu0 0.0
    %375 = vmatprep.subr.mxu0 0.0
    %376 = vmatpush1.msra.mxu0 0.0
    %377 = vmatprep.subr.mxu0 0.0
    %378 = vmatpush1.msra.mxu0 0.0
    %379 = vmatprep.subr.mxu0 0.0
    %380 = vmatpush1.msra.mxu0 0.0
    %381 = vmatprep.subr.mxu0 0.0
    %382 = vmatpush1.msra.mxu0 0.0
    %383 = vmatprep.subr.mxu0 0.0
    %384 = vmatpush1.msra.mxu0 0.0
    %385 = vmatprep.subr.mxu0 0.0
    %386 = vmatpush1.msra.mxu0 0.0
    %387 = vmatprep.subr.mxu0 0.0
    %388 = vmatpush1.msra.mxu0 0.0
    %389 = vmatprep.subr.mxu0 0.0
    %390 = vmatpush1.msra.mxu0 0.0
    %391 = vmatprep.mubr.f32.mxu0 0.0
    %392 = vmatmul.mubr.f32.gmra.mrb[0].mxu0 %v316
    %v393 = vpop.f32.mrb[0].mxu0
    %v394 = vadd.f32 0.0, %v393
    %v395 = vpop.f32.mrb[0].mxu0
    %396 = vmatprep.mubr.f32.mxu0 0.0
    %397 = vmatmul.mubr.f32.gmra.mrb[0].mxu0 %v319
    %v398 = vpop.f32.mrb[0].mxu0
    %v399 = vadd.f32 0.0, %v398
    %v400 = vpop.f32.mrb[0].mxu0
    %401 = vmatprep.mubr.f32.mxu0 0.0
    %402 = vmatmul.mubr.f32.gmra.mrb[0].mxu0 %v322
    %v403 = vpop.f32.mrb[0].mxu0
    %v404 = vadd.f32 0.0, %v403
    %v405 = vpop.f32.mrb[0].mxu0
    %406 = vmatprep.mubr.f32.mxu0 0.0
    %407 = vmatmul.mubr.f32.gmra.mrb[0].mxu0 %v325
    %v408 = vpop.f32.mrb[0].mxu0
    %v409 = vadd.f32 0.0, %v408
    %v410 = vpop.f32.mrb[0].mxu0
    %411 = vdwg.mxu0
    %v413 = vsel %vm314, %v305, 0
    %v416 = vsel %vm314, %v306, 0
    %v419 = vsel %vm314, %v307, 0
    %v422 = vsel %vm314, %v308, 0
    %424 = vmatprep.subr.mxu0 0.0
    %425 = vmatpush1.msra.mxu0 %v298
    %426 = vmatprep.subr.mxu0 0.0
    %427 = vmatpush1.msra.mxu0 %v300
    %428 = vmatprep.subr.mxu0 0.0
    %429 = vmatpush1.msra.mxu0 %v302
    %430 = vmatprep.subr.mxu0 0.0
    %431 = vmatpush1.msra.mxu0 %v304
    %432 = vmatprep.subr.mxu0 0.0
    %433 = vmatpush1.msra.mxu0 0.0
    %434 = vmatprep.subr.mxu0 0.0
    %435 = vmatpush1.msra.mxu0 0.0
    %436 = vmatprep.subr.mxu0 0.0
    %437 = vmatpush1.msra.mxu0 0.0
    %438 = vmatprep.subr.mxu0 0.0
    %439 = vmatpush1.msra.mxu0 0.0
    %440 = vmatprep.subr.mxu0 0.0
    %441 = vmatpush1.msra.mxu0 0.0
    %442 = vmatprep.subr.mxu0 0.0
    %443 = vmatpush1.msra.mxu0 0.0
    %444 = vmatprep.subr.mxu0 0.0
    %445 = vmatpush1.msra.mxu0 0.0
    %446 = vmatprep.subr.mxu0 0.0
    %447 = vmatpush1.msra.mxu0 0.0
    %448 = vmatprep.subr.mxu0 0.0
    %449 = vmatpush1.msra.mxu0 0.0
    %450 = vmatprep.subr.mxu0 0.0
    %451 = vmatpush1.msra.mxu0 0.0
    %452 = vmatprep.subr.mxu0 0.0
    %453 = vmatpush1.msra.mxu0 0.0
    %454 = vmatprep.subr.mxu0 0.0
    %455 = vmatpush1.msra.mxu0 0.0
    %456 = vmatprep.subr.mxu0 0.0
    %457 = vmatpush1.msra.mxu0 0.0
    %458 = vmatprep.subr.mxu0 0.0
    %459 = vmatpush1.msra.mxu0 0.0
    %460 = vmatprep.subr.mxu0 0.0
    %461 = vmatpush1.msra.mxu0 0.0
    %462 = vmatprep.subr.mxu0 0.0
    %463 = vmatpush1.msra.mxu0 0.0
    %464 = vmatprep.subr.mxu0 0.0
    %465 = vmatpush1.msra.mxu0 0.0
    %466 = vmatprep.subr.mxu0 0.0
    %467 = vmatpush1.msra.mxu0 0.0
    %468 = vmatprep.subr.mxu0 0.0
    %469 = vmatpush1.msra.mxu0 0.0
    %470 = vmatprep.subr.mxu0 0.0
    %471 = vmatpush1.msra.mxu0 0.0
    %472 = vmatprep.subr.mxu0 0.0
    %473 = vmatpush1.msra.mxu0 0.0
    %474 = vmatprep.subr.mxu0 0.0
    %475 = vmatpush1.msra.mxu0 0.0
    %476 = vmatprep.subr.mxu0 0.0
    %477 = vmatpush1.msra.mxu0 0.0
    %478 = vmatprep.subr.mxu0 0.0
    %479 = vmatpush1.msra.mxu0 0.0
    %480 = vmatprep.subr.mxu0 0.0
    %481 = vmatpush1.msra.mxu0 0.0
    %482 = vmatprep.subr.mxu0 0.0
    %483 = vmatpush1.msra.mxu0 0.0
    %484 = vmatprep.subr.mxu0 0.0
    %485 = vmatpush1.msra.mxu0 0.0
    %486 = vmatprep.subr.mxu0 0.0
    %487 = vmatpush1.msra.mxu0 0.0
    %488 = vmatprep.mubr.f32.mxu0 0.0
    %489 = vmatmul.mubr.f32.gmra.mrb[0].mxu0 %v413
    %v490 = vpop.f32.mrb[0].mxu0
    %v491 = vadd.f32 %v394, %v490
    %v492 = vpop.f32.mrb[0].mxu0
    %493 = vmatprep.mubr.f32.mxu0 0.0
    %494 = vmatmul.mubr.f32.gmra.mrb[0].mxu0 %v416
    %v495 = vpop.f32.mrb[0].mxu0
    %v496 = vadd.f32 %v399, %v495
    %v497 = vpop.f32.mrb[0].mxu0
    %498 = vmatprep.mubr.f32.mxu0 0.0
    %499 = vmatmul.mubr.f32.gmra.mrb[0].mxu0 %v419
    %v500 = vpop.f32.mrb[0].mxu0
    %v501 = vadd.f32 %v404, %v500
    %v502 = vpop.f32.mrb[0].mxu0
    %503 = vmatprep.mubr.f32.mxu0 0.0
    %504 = vmatmul.mubr.f32.gmra.mrb[0].mxu0 %v422
    %v505 = vpop.f32.mrb[0].mxu0
    %v506 = vadd.f32 %v409, %v505
    %v507 = vpop.f32.mrb[0].mxu0
    %508 = vdwg.mxu0
    %509 = vrot.lane.b32.xlu0 %v293, 127
    %v510 = vpop.permute.xlu0 %509
    %511 = vrot.lane.b32.xlu0 %v294, 127
    %v512 = vpop.permute.xlu0 %511
    %513 = vrot.lane.b32.xlu0 %v295, 127
    %v514 = vpop.permute.xlu0 %513
    %515 = vrot.lane.b32.xlu0 %v296, 127
    %v516 = vpop.permute.xlu0 %515
    %s517 = scalar_lea.vmem [#allocation2], 64
    %v518 = vld [vmem:[%s517] sm:$0xff]
    %v519 = vld [vmem:[%s517 + $0x8] sm:$0xff]
    %v520 = vld [vmem:[%s517 + $0x10] sm:$0xff]
    %v521 = vld [vmem:[%s517 + $0x18] sm:$0xff]
    %v523 = vsel %vm314, %v518, 0
    %v526 = vsel %vm314, %v519, 0
    %v529 = vsel %vm314, %v520, 0
    %v532 = vsel %vm314, %v521, 0
    %534 = vmatprep.subr.mxu0 0.0
    %535 = vmatpush1.msra.mxu0 %v510
    %536 = vmatprep.subr.mxu0 0.0
    %537 = vmatpush1.msra.mxu0 %v512
    %538 = vmatprep.subr.mxu0 0.0
    %539 = vmatpush1.msra.mxu0 %v514
    %540 = vmatprep.subr.mxu0 0.0
    %541 = vmatpush1.msra.mxu0 %v516
    %542 = vmatprep.subr.mxu0 0.0
    %543 = vmatpush1.msra.mxu0 0.0
    %544 = vmatprep.subr.mxu0 0.0
    %545 = vmatpush1.msra.mxu0 0.0
    %546 = vmatprep.subr.mxu0 0.0
    %547 = vmatpush1.msra.mxu0 0.0
    %548 = vmatprep.subr.mxu0 0.0
    %549 = vmatpush1.msra.mxu0 0.0
    %550 = vmatprep.subr.mxu0 0.0
    %551 = vmatpush1.msra.mxu0 0.0
    %552 = vmatprep.subr.mxu0 0.0
    %553 = vmatpush1.msra.mxu0 0.0
    %554 = vmatprep.subr.mxu0 0.0
    %555 = vmatpush1.msra.mxu0 0.0
    %556 = vmatprep.subr.mxu0 0.0
    %557 = vmatpush1.msra.mxu0 0.0
    %558 = vmatprep.subr.mxu0 0.0
    %559 = vmatpush1.msra.mxu0 0.0
    %560 = vmatprep.subr.mxu0 0.0
    %561 = vmatpush1.msra.mxu0 0.0
    %562 = vmatprep.subr.mxu0 0.0
    %563 = vmatpush1.msra.mxu0 0.0
    %564 = vmatprep.subr.mxu0 0.0
    %565 = vmatpush1.msra.mxu0 0.0
    %566 = vmatprep.subr.mxu0 0.0
    %567 = vmatpush1.msra.mxu0 0.0
    %568 = vmatprep.subr.mxu0 0.0
    %569 = vmatpush1.msra.mxu0 0.0
    %570 = vmatprep.subr.mxu0 0.0
    %571 = vmatpush1.msra.mxu0 0.0
    %572 = vmatprep.subr.mxu0 0.0
    %573 = vmatpush1.msra.mxu0 0.0
    %574 = vmatprep.subr.mxu0 0.0
    %575 = vmatpush1.msra.mxu0 0.0
    %576 = vmatprep.subr.mxu0 0.0
    %577 = vmatpush1.msra.mxu0 0.0
    %578 = vmatprep.subr.mxu0 0.0
    %579 = vmatpush1.msra.mxu0 0.0
    %580 = vmatprep.subr.mxu0 0.0
    %581 = vmatpush1.msra.mxu0 0.0
    %582 = vmatprep.subr.mxu0 0.0
    %583 = vmatpush1.msra.mxu0 0.0
    %584 = vmatprep.subr.mxu0 0.0
    %585 = vmatpush1.msra.mxu0 0.0
    %586 = vmatprep.subr.mxu0 0.0
    %587 = vmatpush1.msra.mxu0 0.0
    %588 = vmatprep.subr.mxu0 0.0
    %589 = vmatpush1.msra.mxu0 0.0
    %590 = vmatprep.subr.mxu0 0.0
    %591 = vmatpush1.msra.mxu0 0.0
    %592 = vmatprep.subr.mxu0 0.0
    %593 = vmatpush1.msra.mxu0 0.0
    %594 = vmatprep.subr.mxu0 0.0
    %595 = vmatpush1.msra.mxu0 0.0
    %596 = vmatprep.subr.mxu0 0.0
    %597 = vmatpush1.msra.mxu0 0.0
    %598 = vmatprep.mubr.f32.mxu0 0.0
    %599 = vmatmul.mubr.f32.gmra.mrb[0].mxu0 %v523
    %v600 = vpop.f32.mrb[0].mxu0
    %v601 = vadd.f32 0.0, %v600
    %v602 = vpop.f32.mrb[0].mxu0
    %603 = vmatprep.mubr.f32.mxu0 0.0
    %604 = vmatmul.mubr.f32.gmra.mrb[0].mxu0 %v526
    %v605 = vpop.f32.mrb[0].mxu0
    %v606 = vadd.f32 0.0, %v605
    %v607 = vpop.f32.mrb[0].mxu0
    %608 = vmatprep.mubr.f32.mxu0 0.0
    %609 = vmatmul.mubr.f32.gmra.mrb[0].mxu0 %v529
    %v610 = vpop.f32.mrb[0].mxu0
    %v611 = vadd.f32 0.0, %v610
    %v612 = vpop.f32.mrb[0].mxu0
    %613 = vmatprep.mubr.f32.mxu0 0.0
    %614 = vmatmul.mubr.f32.gmra.mrb[0].mxu0 %v532
    %v615 = vpop.f32.mrb[0].mxu0
    %v616 = vadd.f32 0.0, %v615
    %v617 = vpop.f32.mrb[0].mxu0
    %618 = vdwg.mxu0
    %v619 = vadd.f32 %v491, %v601
    %v620 = vadd.f32 %v496, %v606
    %v621 = vadd.f32 %v501, %v611
    %v622 = vadd.f32 %v506, %v616
    %v623 = vmul.f32 %v619, %v143
    %v624 = vmul.f32 %v620, %v143
    %v625 = vmul.f32 %v621, %v143
    %v626 = vmul.f32 %v622, %v143
    %627 = vadd.xlane.f32.xlu0 %v623
    %v628 = vpop.xlane.xlu0 %627
    %629 = vadd.xlane.f32.xlu0 %v624
    %v630 = vpop.xlane.xlu0 %629
    %631 = vadd.xlane.f32.xlu0 %v625
    %v632 = vpop.xlane.xlu0 %631
    %633 = vadd.xlane.f32.xlu0 %v626
    %v634 = vpop.xlane.xlu0 %633
    %v635 = vmul.f32 %v623, %v619
    %v636 = vmul.f32 %v624, %v620
    %v637 = vmul.f32 %v625, %v621
    %v638 = vmul.f32 %v626, %v622
    %639 = vadd.xlane.f32.xlu0 %v635
    %v640 = vpop.xlane.xlu0 %639
    %641 = vadd.xlane.f32.xlu0 %v636
    %v642 = vpop.xlane.xlu0 %641
    %643 = vadd.xlane.f32.xlu0 %v637
    %v644 = vpop.xlane.xlu0 %643
    %645 = vadd.xlane.f32.xlu0 %v638
    %v646 = vpop.xlane.xlu0 %645
    %v647 = vmul.f32 %v628, 0.03125
    %v648 = vmul.f32 %v630, 0.03125
    %v649 = vmul.f32 %v632, 0.03125
    %v650 = vmul.f32 %v634, 0.03125
    %v651 = vmul.f32 %v640, 0.03125
    %v652 = vmul.f32 %v642, 0.03125
    %v653 = vmul.f32 %v644, 0.03125
    %v654 = vmul.f32 %v646, 0.03125
    %v655 = vmul.f32 %v647, %v647
    %v656 = vmul.f32 %v648, %v648
    %v657 = vmul.f32 %v649, %v649
    %v658 = vmul.f32 %v650, %v650
    %v659 = vsub.f32 %v651, %v655
    %v660 = vsub.f32 %v652, %v656
    %v661 = vsub.f32 %v653, %v657
    %v662 = vsub.f32 %v654, %v658
    %v663 = vadd.f32 %v659, 1e-05
    %v664 = vadd.f32 %v660, 1e-05
    %v665 = vadd.f32 %v661, 1e-05
    %v666 = vadd.f32 %v662, 1e-05
    %v667 = vrsqrt.pop %v663
    %v668 = vrsqrt.pop %v664
    %v669 = vrsqrt.pop %v665
    %v670 = vrsqrt.pop %v666
    %v671 = vmul.f32 %v185, %v667
    %v672 = vmul.f32 %v186, %v668
    %v673 = vmul.f32 %v187, %v669
    %v674 = vmul.f32 %v188, %v670
    %676 = vset.pattern.permute.xlu0 2
    %677 = vperm.xlu0 %676, %v671
    %v678 = vpop.permute.xlu0 %677
    %681 = vset.pattern.permute.xlu0 2
    %682 = vperm.xlu0 %681, %v672
    %v683 = vpop.permute.xlu0 %682
    %686 = vset.pattern.permute.xlu0 2
    %687 = vperm.xlu0 %686, %v673
    %v688 = vpop.permute.xlu0 %687
    %691 = vset.pattern.permute.xlu0 2
    %692 = vperm.xlu0 %691, %v674
    %v693 = vpop.permute.xlu0 %692
    %v695 = vmul.f32 %v619, %v678
    %v696 = vmul.f32 %v620, %v683
    %v697 = vmul.f32 %v621, %v688
    %v698 = vmul.f32 %v622, %v693
    %v699 = vmul.f32 %v647, %v671
    %v700 = vmul.f32 %v648, %v672
    %v701 = vmul.f32 %v649, %v673
    %v702 = vmul.f32 %v650, %v674
    %707 = vrot.lane.b32.xlu0 %v699, 1
    %v708 = vpop.permute.xlu0 %707
    %709 = vrot.lane.b32.xlu0 %v700, 1
    %v710 = vpop.permute.xlu0 %709
    %711 = vrot.lane.b32.xlu0 %v701, 1
    %v712 = vpop.permute.xlu0 %711
    %713 = vrot.lane.b32.xlu0 %v702, 1
    %v714 = vpop.permute.xlu0 %713
    %v719 = vsub.f32 %v185, %v708
    %v720 = vsub.f32 %v186, %v710
    %v721 = vsub.f32 %v187, %v712
    %v722 = vsub.f32 %v188, %v714
    %724 = vset.pattern.permute.xlu0 3
    %725 = vperm.xlu0 %724, %v719
    %v726 = vpop.permute.xlu0 %725
    %729 = vset.pattern.permute.xlu0 3
    %730 = vperm.xlu0 %729, %v720
    %v731 = vpop.permute.xlu0 %730
    %734 = vset.pattern.permute.xlu0 3
    %735 = vperm.xlu0 %734, %v721
    %v736 = vpop.permute.xlu0 %735
    %739 = vset.pattern.permute.xlu0 3
    %740 = vperm.xlu0 %739, %v722
    %v741 = vpop.permute.xlu0 %740
    %v743 = vadd.f32 %v695, %v726
    %v744 = vadd.f32 %v696, %v731
    %v745 = vadd.f32 %v697, %v736
    %v746 = vadd.f32 %v698, %v741
    %vm747 = vcmp.gt.f32.partialorder %v743, 0.0
    %vm748 = vcmp.gt.f32.partialorder %v744, 0.0
    %vm749 = vcmp.gt.f32.partialorder %v745, 0.0
    %vm750 = vcmp.gt.f32.partialorder %v746, 0.0
    %v751 = vmul.f32 %v743, 1.442695
    %v752 = vpow.pop %v751
    %v753 = vmul.f32 %v744, 1.442695
    %v754 = vpow.pop %v753
    %v755 = vmul.f32 %v745, 1.442695
    %v756 = vpow.pop %v755
    %v757 = vmul.f32 %v746, 1.442695
    %v758 = vpow.pop %v757
    %v759 = vsub.f32 %v752, 1.0
    %v760 = vsub.f32 %v754, 1.0
    %v761 = vsub.f32 %v756, 1.0
    %v762 = vsub.f32 %v758, 1.0
    %v763 = vsel %vm747, %v743, %v759
    %v764 = vsel %vm748, %v744, %v760
    %v765 = vsel %vm749, %v745, %v761
    %v766 = vsel %vm750, %v746, %v762
    %v767 = vmul.f32 %v763, %v143
    %v768 = vmul.f32 %v764, %v143
    %v769 = vmul.f32 %v765, %v143
    %v770 = vmul.f32 %v766, %v143
    %771 = vrot.lane.b32.xlu0 %v767, 1
    %v772 = vpop.permute.xlu0 %771
    %773 = vrot.lane.b32.xlu0 %v768, 1
    %v774 = vpop.permute.xlu0 %773
    %775 = vrot.lane.b32.xlu0 %v769, 1
    %v776 = vpop.permute.xlu0 %775
    %777 = vrot.lane.b32.xlu0 %v770, 1
    %v778 = vpop.permute.xlu0 %777
    %s779 = scalar_lea.vmem [#allocation2], 96
    %v780 = vld [vmem:[%s779] sm:$0xff]
    %v781 = vld [vmem:[%s779 + $0x8] sm:$0xff]
    %v782 = vld [vmem:[%s779 + $0x10] sm:$0xff]
    %v783 = vld [vmem:[%s779 + $0x18] sm:$0xff]
    %s784 = scalar_lea.vmem [#allocation2], 128
    %v785 = vld [vmem:[%s784] sm:$0xff]
    %v786 = vld [vmem:[%s784 + $0x8] sm:$0xff]
    %v787 = vld [vmem:[%s784 + $0x10] sm:$0xff]
    %v788 = vld [vmem:[%s784 + $0x18] sm:$0xff]
    %v790 = vsel %vm314, %v785, 0
    %v793 = vsel %vm314, %v786, 0
    %v796 = vsel %vm314, %v787, 0
    %v799 = vsel %vm314, %v788, 0
    %801 = vmatprep.subr.mxu0 0.0
    %802 = vmatpush1.msra.mxu0 %v767
    %803 = vmatprep.subr.mxu0 0.0
    %804 = vmatpush1.msra.mxu0 %v768
    %805 = vmatprep.subr.mxu0 0.0
    %806 = vmatpush1.msra.mxu0 %v769
    %807 = vmatprep.subr.mxu0 0.0
    %808 = vmatpush1.msra.mxu0 %v770
    %809 = vmatprep.subr.mxu0 0.0
    %810 = vmatpush1.msra.mxu0 0.0
    %811 = vmatprep.subr.mxu0 0.0
    %812 = vmatpush1.msra.mxu0 0.0
    %813 = vmatprep.subr.mxu0 0.0
    %814 = vmatpush1.msra.mxu0 0.0
    %815 = vmatprep.subr.mxu0 0.0
    %816 = vmatpush1.msra.mxu0 0.0
    %817 = vmatprep.subr.mxu0 0.0
    %818 = vmatpush1.msra.mxu0 0.0
    %819 = vmatprep.subr.mxu0 0.0
    %820 = vmatpush1.msra.mxu0 0.0
    %821 = vmatprep.subr.mxu0 0.0
    %822 = vmatpush1.msra.mxu0 0.0
    %823 = vmatprep.subr.mxu0 0.0
    %824 = vmatpush1.msra.mxu0 0.0
    %825 = vmatprep.subr.mxu0 0.0
    %826 = vmatpush1.msra.mxu0 0.0
    %827 = vmatprep.subr.mxu0 0.0
    %828 = vmatpush1.msra.mxu0 0.0
    %829 = vmatprep.subr.mxu0 0.0
    %830 = vmatpush1.msra.mxu0 0.0
    %831 = vmatprep.subr.mxu0 0.0
    %832 = vmatpush1.msra.mxu0 0.0
    %833 = vmatprep.subr.mxu0 0.0
    %834 = vmatpush1.msra.mxu0 0.0
    %835 = vmatprep.subr.mxu0 0.0
    %836 = vmatpush1.msra.mxu0 0.0
    %837 = vmatprep.subr.mxu0 0.0
    %838 = vmatpush1.msra.mxu0 0.0
    %839 = vmatprep.subr.mxu0 0.0
    %840 = vmatpush1.msra.mxu0 0.0
    %841 = vmatprep.subr.mxu0 0.0
    %842 = vmatpush1.msra.mxu0 0.0
    %843 = vmatprep.subr.mxu0 0.0
    %844 = vmatpush1.msra.mxu0 0.0
    %845 = vmatprep.subr.mxu0 0.0
    %846 = vmatpush1.msra.mxu0 0.0
    %847 = vmatprep.subr.mxu0 0.0
    %848 = vmatpush1.msra.mxu0 0.0
    %849 = vmatprep.subr.mxu0 0.0
    %850 = vmatpush1.msra.mxu0 0.0
    %851 = vmatprep.subr.mxu0 0.0
    %852 = vmatpush1.msra.mxu0 0.0
    %853 = vmatprep.subr.mxu0 0.0
    %854 = vmatpush1.msra.mxu0 0.0
    %855 = vmatprep.subr.mxu0 0.0
    %856 = vmatpush1.msra.mxu0 0.0
    %857 = vmatprep.subr.mxu0 0.0
    %858 = vmatpush1.msra.mxu0 0.0
    %859 = vmatprep.subr.mxu0 0.0
    %860 = vmatpush1.msra.mxu0 0.0
    %861 = vmatprep.subr.mxu0 0.0
    %862 = vmatpush1.msra.mxu0 0.0
    %863 = vmatprep.subr.mxu0 0.0
    %864 = vmatpush1.msra.mxu0 0.0
    %865 = vmatprep.mubr.f32.mxu0 0.0
    %866 = vmatmul.mubr.f32.gmra.mrb[0].mxu0 %v790
    %v867 = vpop.f32.mrb[0].mxu0
    %v868 = vadd.f32 0.0, %v867
    %v869 = vpop.f32.mrb[0].mxu0
    %870 = vmatprep.mubr.f32.mxu0 0.0
    %871 = vmatmul.mubr.f32.gmra.mrb[0].mxu0 %v793
    %v872 = vpop.f32.mrb[0].mxu0
    %v873 = vadd.f32 0.0, %v872
    %v874 = vpop.f32.mrb[0].mxu0
    %875 = vmatprep.mubr.f32.mxu0 0.0
    %876 = vmatmul.mubr.f32.gmra.mrb[0].mxu0 %v796
    %v877 = vpop.f32.mrb[0].mxu0
    %v878 = vadd.f32 0.0, %v877
    %v879 = vpop.f32.mrb[0].mxu0
    %880 = vmatprep.mubr.f32.mxu0 0.0
    %881 = vmatmul.mubr.f32.gmra.mrb[0].mxu0 %v799
    %v882 = vpop.f32.mrb[0].mxu0
    %v883 = vadd.f32 0.0, %v882
    %v884 = vpop.f32.mrb[0].mxu0
    %885 = vdwg.mxu0
    %v887 = vsel %vm314, %v780, 0
    %v890 = vsel %vm314, %v781, 0
    %v893 = vsel %vm314, %v782, 0
    %v896 = vsel %vm314, %v783, 0
    %898 = vmatprep.subr.mxu0 0.0
    %899 = vmatpush1.msra.mxu0 %v772
    %900 = vmatprep.subr.mxu0 0.0
    %901 = vmatpush1.msra.mxu0 %v774
    %902 = vmatprep.subr.mxu0 0.0
    %903 = vmatpush1.msra.mxu0 %v776
    %904 = vmatprep.subr.mxu0 0.0
    %905 = vmatpush1.msra.mxu0 %v778
    %906 = vmatprep.subr.mxu0 0.0
    %907 = vmatpush1.msra.mxu0 0.0
    %908 = vmatprep.subr.mxu0 0.0
    %909 = vmatpush1.msra.mxu0 0.0
    %910 = vmatprep.subr.mxu0 0.0
    %911 = vmatpush1.msra.mxu0 0.0
    %912 = vmatprep.subr.mxu0 0.0
    %913 = vmatpush1.msra.mxu0 0.0
    %914 = vmatprep.subr.mxu0 0.0
    %915 = vmatpush1.msra.mxu0 0.0
    %916 = vmatprep.subr.mxu0 0.0
    %917 = vmatpush1.msra.mxu0 0.0
    %918 = vmatprep.subr.mxu0 0.0
    %919 = vmatpush1.msra.mxu0 0.0
    %920 = vmatprep.subr.mxu0 0.0
    %921 = vmatpush1.msra.mxu0 0.0
    %922 = vmatprep.subr.mxu0 0.0
    %923 = vmatpush1.msra.mxu0 0.0
    %924 = vmatprep.subr.mxu0 0.0
    %925 = vmatpush1.msra.mxu0 0.0
    %926 = vmatprep.subr.mxu0 0.0
    %927 = vmatpush1.msra.mxu0 0.0
    %928 = vmatprep.subr.mxu0 0.0
    %929 = vmatpush1.msra.mxu0 0.0
    %930 = vmatprep.subr.mxu0 0.0
    %931 = vmatpush1.msra.mxu0 0.0
    %932 = vmatprep.subr.mxu0 0.0
    %933 = vmatpush1.msra.mxu0 0.0
    %934 = vmatprep.subr.mxu0 0.0
    %935 = vmatpush1.msra.mxu0 0.0
    %936 = vmatprep.subr.mxu0 0.0
    %937 = vmatpush1.msra.mxu0 0.0
    %938 = vmatprep.subr.mxu0 0.0
    %939 = vmatpush1.msra.mxu0 0.0
    %940 = vmatprep.subr.mxu0 0.0
    %941 = vmatpush1.msra.mxu0 0.0
    %942 = vmatprep.subr.mxu0 0.0
    %943 = vmatpush1.msra.mxu0 0.0
    %944 = vmatprep.subr.mxu0 0.0
    %945 = vmatpush1.msra.mxu0 0.0
    %946 = vmatprep.subr.mxu0 0.0
    %947 = vmatpush1.msra.mxu0 0.0
    %948 = vmatprep.subr.mxu0 0.0
    %949 = vmatpush1.msra.mxu0 0.0
    %950 = vmatprep.subr.mxu0 0.0
    %951 = vmatpush1.msra.mxu0 0.0
    %952 = vmatprep.subr.mxu0 0.0
    %953 = vmatpush1.msra.mxu0 0.0
    %954 = vmatprep.subr.mxu0 0.0
    %955 = vmatpush1.msra.mxu0 0.0
    %956 = vmatprep.subr.mxu0 0.0
    %957 = vmatpush1.msra.mxu0 0.0
    %958 = vmatprep.subr.mxu0 0.0
    %959 = vmatpush1.msra.mxu0 0.0
    %960 = vmatprep.subr.mxu0 0.0
    %961 = vmatpush1.msra.mxu0 0.0
    %962 = vmatprep.mubr.f32.mxu0 0.0
    %963 = vmatmul.mubr.f32.gmra.mrb[0].mxu0 %v887
    %v964 = vpop.f32.mrb[0].mxu0
    %v965 = vadd.f32 %v868, %v964
    %v966 = vpop.f32.mrb[0].mxu0
    %967 = vmatprep.mubr.f32.mxu0 0.0
    %968 = vmatmul.mubr.f32.gmra.mrb[0].mxu0 %v890
    %v969 = vpop.f32.mrb[0].mxu0
    %v970 = vadd.f32 %v873, %v969
    %v971 = vpop.f32.mrb[0].mxu0
    %972 = vmatprep.mubr.f32.mxu0 0.0
    %973 = vmatmul.mubr.f32.gmra.mrb[0].mxu0 %v893
    %v974 = vpop.f32.mrb[0].mxu0
    %v975 = vadd.f32 %v878, %v974
    %v976 = vpop.f32.mrb[0].mxu0
    %977 = vmatprep.mubr.f32.mxu0 0.0
    %978 = vmatmul.mubr.f32.gmra.mrb[0].mxu0 %v896
    %v979 = vpop.f32.mrb[0].mxu0
    %v980 = vadd.f32 %v883, %v979
    %v981 = vpop.f32.mrb[0].mxu0
    %982 = vdwg.mxu0
    %983 = vrot.lane.b32.xlu0 %v767, 127
    %v984 = vpop.permute.xlu0 %983
    %985 = vrot.lane.b32.xlu0 %v768, 127
    %v986 = vpop.permute.xlu0 %985
    %987 = vrot.lane.b32.xlu0 %v769, 127
    %v988 = vpop.permute.xlu0 %987
    %989 = vrot.lane.b32.xlu0 %v770, 127
    %v990 = vpop.permute.xlu0 %989
    %s991 = scalar_lea.vmem [#allocation2], 160
    %v992 = vld [vmem:[%s991] sm:$0xff]
    %v993 = vld [vmem:[%s991 + $0x8] sm:$0xff]
    %v994 = vld [vmem:[%s991 + $0x10] sm:$0xff]
    %v995 = vld [vmem:[%s991 + $0x18] sm:$0xff]
    %v997 = vsel %vm314, %v992, 0
    %v1000 = vsel %vm314, %v993, 0
    %v1003 = vsel %vm314, %v994, 0
    %v1006 = vsel %vm314, %v995, 0
    %1008 = vmatprep.subr.mxu0 0.0
    %1009 = vmatpush1.msra.mxu0 %v984
    %1010 = vmatprep.subr.mxu0 0.0
    %1011 = vmatpush1.msra.mxu0 %v986
    %1012 = vmatprep.subr.mxu0 0.0
    %1013 = vmatpush1.msra.mxu0 %v988
    %1014 = vmatprep.subr.mxu0 0.0
    %1015 = vmatpush1.msra.mxu0 %v990
    %1016 = vmatprep.subr.mxu0 0.0
    %1017 = vmatpush1.msra.mxu0 0.0
    %1018 = vmatprep.subr.mxu0 0.0
    %1019 = vmatpush1.msra.mxu0 0.0
    %1020 = vmatprep.subr.mxu0 0.0
    %1021 = vmatpush1.msra.mxu0 0.0
    %1022 = vmatprep.subr.mxu0 0.0
    %1023 = vmatpush1.msra.mxu0 0.0
    %1024 = vmatprep.subr.mxu0 0.0
    %1025 = vmatpush1.msra.mxu0 0.0
    %1026 = vmatprep.subr.mxu0 0.0
    %1027 = vmatpush1.msra.mxu0 0.0
    %1028 = vmatprep.subr.mxu0 0.0
    %1029 = vmatpush1.msra.mxu0 0.0
    %1030 = vmatprep.subr.mxu0 0.0
    %1031 = vmatpush1.msra.mxu0 0.0
    %1032 = vmatprep.subr.mxu0 0.0
    %1033 = vmatpush1.msra.mxu0 0.0
    %1034 = vmatprep.subr.mxu0 0.0
    %1035 = vmatpush1.msra.mxu0 0.0
    %1036 = vmatprep.subr.mxu0 0.0
    %1037 = vmatpush1.msra.mxu0 0.0
    %1038 = vmatprep.subr.mxu0 0.0
    %1039 = vmatpush1.msra.mxu0 0.0
    %1040 = vmatprep.subr.mxu0 0.0
    %1041 = vmatpush1.msra.mxu0 0.0
    %1042 = vmatprep.subr.mxu0 0.0
    %1043 = vmatpush1.msra.mxu0 0.0
    %1044 = vmatprep.subr.mxu0 0.0
    %1045 = vmatpush1.msra.mxu0 0.0
    %1046 = vmatprep.subr.mxu0 0.0
    %1047 = vmatpush1.msra.mxu0 0.0
    %1048 = vmatprep.subr.mxu0 0.0
    %1049 = vmatpush1.msra.mxu0 0.0
    %1050 = vmatprep.subr.mxu0 0.0
    %1051 = vmatpush1.msra.mxu0 0.0
    %1052 = vmatprep.subr.mxu0 0.0
    %1053 = vmatpush1.msra.mxu0 0.0
    %1054 = vmatprep.subr.mxu0 0.0
    %1055 = vmatpush1.msra.mxu0 0.0
    %1056 = vmatprep.subr.mxu0 0.0
    %1057 = vmatpush1.msra.mxu0 0.0
    %1058 = vmatprep.subr.mxu0 0.0
    %1059 = vmatpush1.msra.mxu0 0.0
    %1060 = vmatprep.subr.mxu0 0.0
    %1061 = vmatpush1.msra.mxu0 0.0
    %1062 = vmatprep.subr.mxu0 0.0
    %1063 = vmatpush1.msra.mxu0 0.0
    %1064 = vmatprep.subr.mxu0 0.0
    %1065 = vmatpush1.msra.mxu0 0.0
    %1066 = vmatprep.subr.mxu0 0.0
    %1067 = vmatpush1.msra.mxu0 0.0
    %1068 = vmatprep.subr.mxu0 0.0
    %1069 = vmatpush1.msra.mxu0 0.0
    %1070 = vmatprep.subr.mxu0 0.0
    %1071 = vmatpush1.msra.mxu0 0.0
    %1072 = vmatprep.mubr.f32.mxu0 0.0
    %1073 = vmatmul.mubr.f32.gmra.mrb[0].mxu0 %v997
    %v1074 = vpop.f32.mrb[0].mxu0
    %v1075 = vadd.f32 0.0, %v1074
    %v1076 = vpop.f32.mrb[0].mxu0
    %1077 = vmatprep.mubr.f32.mxu0 0.0
    %1078 = vmatmul.mubr.f32.gmra.mrb[0].mxu0 %v1000
    %v1079 = vpop.f32.mrb[0].mxu0
    %v1080 = vadd.f32 0.0, %v1079
    %v1081 = vpop.f32.mrb[0].mxu0
    %1082 = vmatprep.mubr.f32.mxu0 0.0
    %1083 = vmatmul.mubr.f32.gmra.mrb[0].mxu0 %v1003
    %v1084 = vpop.f32.mrb[0].mxu0
    %v1085 = vadd.f32 0.0, %v1084
    %v1086 = vpop.f32.mrb[0].mxu0
    %1087 = vmatprep.mubr.f32.mxu0 0.0
    %1088 = vmatmul.mubr.f32.gmra.mrb[0].mxu0 %v1006
    %v1089 = vpop.f32.mrb[0].mxu0
    %v1090 = vadd.f32 0.0, %v1089
    %v1091 = vpop.f32.mrb[0].mxu0
    %1092 = vdwg.mxu0
    %v1093 = vadd.f32 %v965, %v1075
    %v1094 = vadd.f32 %v970, %v1080
    %v1095 = vadd.f32 %v975, %v1085
    %v1096 = vadd.f32 %v980, %v1090
    %v1097 = vmul.f32 %v1093, %v143
    %v1098 = vmul.f32 %v1094, %v143
    %v1099 = vmul.f32 %v1095, %v143
    %v1100 = vmul.f32 %v1096, %v143
    %1101 = vadd.xlane.f32.xlu0 %v1097
    %v1102 = vpop.xlane.xlu0 %1101
    %1103 = vadd.xlane.f32.xlu0 %v1098
    %v1104 = vpop.xlane.xlu0 %1103
    %1105 = vadd.xlane.f32.xlu0 %v1099
    %v1106 = vpop.xlane.xlu0 %1105
    %1107 = vadd.xlane.f32.xlu0 %v1100
    %v1108 = vpop.xlane.xlu0 %1107
    %v1109 = vmul.f32 %v1097, %v1093
    %v1110 = vmul.f32 %v1098, %v1094
    %v1111 = vmul.f32 %v1099, %v1095
    %v1112 = vmul.f32 %v1100, %v1096
    %1113 = vadd.xlane.f32.xlu0 %v1109
    %v1114 = vpop.xlane.xlu0 %1113
    %1115 = vadd.xlane.f32.xlu0 %v1110
    %v1116 = vpop.xlane.xlu0 %1115
    %1117 = vadd.xlane.f32.xlu0 %v1111
    %v1118 = vpop.xlane.xlu0 %1117
    %1119 = vadd.xlane.f32.xlu0 %v1112
    %v1120 = vpop.xlane.xlu0 %1119
    %v1121 = vmul.f32 %v1102, 0.03125
    %v1122 = vmul.f32 %v1104, 0.03125
    %v1123 = vmul.f32 %v1106, 0.03125
    %v1124 = vmul.f32 %v1108, 0.03125
    %v1125 = vmul.f32 %v1114, 0.03125
    %v1126 = vmul.f32 %v1116, 0.03125
    %v1127 = vmul.f32 %v1118, 0.03125
    %v1128 = vmul.f32 %v1120, 0.03125
    %v1129 = vmul.f32 %v1121, %v1121
    %v1130 = vmul.f32 %v1122, %v1122
    %v1131 = vmul.f32 %v1123, %v1123
    %v1132 = vmul.f32 %v1124, %v1124
    %v1133 = vsub.f32 %v1125, %v1129
    %v1134 = vsub.f32 %v1126, %v1130
    %v1135 = vsub.f32 %v1127, %v1131
    %v1136 = vsub.f32 %v1128, %v1132
    %v1137 = vadd.f32 %v1133, 1e-05
    %v1138 = vadd.f32 %v1134, 1e-05
    %v1139 = vadd.f32 %v1135, 1e-05
    %v1140 = vadd.f32 %v1136, 1e-05
    %v1141 = vrsqrt.pop %v1137
    %v1142 = vrsqrt.pop %v1138
    %v1143 = vrsqrt.pop %v1139
    %v1144 = vrsqrt.pop %v1140
    %v1145 = vmul.f32 %v185, %v1141
    %v1146 = vmul.f32 %v186, %v1142
    %v1147 = vmul.f32 %v187, %v1143
    %v1148 = vmul.f32 %v188, %v1144
    %1150 = vset.pattern.permute.xlu0 4
    %1151 = vperm.xlu0 %1150, %v1145
    %v1152 = vpop.permute.xlu0 %1151
    %1155 = vset.pattern.permute.xlu0 4
    %1156 = vperm.xlu0 %1155, %v1146
    %v1157 = vpop.permute.xlu0 %1156
    %1160 = vset.pattern.permute.xlu0 4
    %1161 = vperm.xlu0 %1160, %v1147
    %v1162 = vpop.permute.xlu0 %1161
    %1165 = vset.pattern.permute.xlu0 4
    %1166 = vperm.xlu0 %1165, %v1148
    %v1167 = vpop.permute.xlu0 %1166
    %v1169 = vmul.f32 %v1093, %v1152
    %v1170 = vmul.f32 %v1094, %v1157
    %v1171 = vmul.f32 %v1095, %v1162
    %v1172 = vmul.f32 %v1096, %v1167
    %v1173 = vmul.f32 %v1121, %v1145
    %v1174 = vmul.f32 %v1122, %v1146
    %v1175 = vmul.f32 %v1123, %v1147
    %v1176 = vmul.f32 %v1124, %v1148
    %1181 = vrot.lane.b32.xlu0 %v1173, 1
    %v1182 = vpop.permute.xlu0 %1181
    %1183 = vrot.lane.b32.xlu0 %v1174, 1
    %v1184 = vpop.permute.xlu0 %1183
    %1185 = vrot.lane.b32.xlu0 %v1175, 1
    %v1186 = vpop.permute.xlu0 %1185
    %1187 = vrot.lane.b32.xlu0 %v1176, 1
    %v1188 = vpop.permute.xlu0 %1187
    %v1193 = vsub.f32 %v185, %v1182
    %v1194 = vsub.f32 %v186, %v1184
    %v1195 = vsub.f32 %v187, %v1186
    %v1196 = vsub.f32 %v188, %v1188
    %1198 = vset.pattern.permute.xlu0 5
    %1199 = vperm.xlu0 %1198, %v1193
    %v1200 = vpop.permute.xlu0 %1199
    %1203 = vset.pattern.permute.xlu0 5
    %1204 = vperm.xlu0 %1203, %v1194
    %v1205 = vpop.permute.xlu0 %1204
    %1208 = vset.pattern.permute.xlu0 5
    %1209 = vperm.xlu0 %1208, %v1195
    %v1210 = vpop.permute.xlu0 %1209
    %1213 = vset.pattern.permute.xlu0 5
    %1214 = vperm.xlu0 %1213, %v1196
    %v1215 = vpop.permute.xlu0 %1214
    %v1217 = vadd.f32 %v1169, %v1200
    %v1218 = vadd.f32 %v1170, %v1205
    %v1219 = vadd.f32 %v1171, %v1210
    %v1220 = vadd.f32 %v1172, %v1215
    %v1221 = vadd.f32 %v1217, %v293
    %v1222 = vadd.f32 %v1218, %v294
    %v1223 = vadd.f32 %v1219, %v295
    %v1224 = vadd.f32 %v1220, %v296
    %vm1225 = vcmp.gt.f32.partialorder %v1221, 0.0
    %vm1226 = vcmp.gt.f32.partialorder %v1222, 0.0
    %vm1227 = vcmp.gt.f32.partialorder %v1223, 0.0
    %vm1228 = vcmp.gt.f32.partialorder %v1224, 0.0
    %v1229 = vmul.f32 %v1221, 1.442695
    %v1230 = vpow.pop %v1229
    %v1231 = vmul.f32 %v1222, 1.442695
    %v1232 = vpow.pop %v1231
    %v1233 = vmul.f32 %v1223, 1.442695
    %v1234 = vpow.pop %v1233
    %v1235 = vmul.f32 %v1224, 1.442695
    %v1236 = vpow.pop %v1235
    %v1237 = vsub.f32 %v1230, 1.0
    %v1238 = vsub.f32 %v1232, 1.0
    %v1239 = vsub.f32 %v1234, 1.0
    %v1240 = vsub.f32 %v1236, 1.0
    %v1241 = vsel %vm1225, %v1221, %v1237
    %v1242 = vsel %vm1226, %v1222, %v1238
    %v1243 = vsel %vm1227, %v1223, %v1239
    %v1244 = vsel %vm1228, %v1224, %v1240
    %v1245 = vmul.f32 %v1241, %v143
    %v1246 = vmul.f32 %v1242, %v143
    %v1247 = vmul.f32 %v1243, %v143
    %v1248 = vmul.f32 %v1244, %v143
    %1249 = vrot.lane.b32.xlu0 %v1245, 1
    %v1250 = vpop.permute.xlu0 %1249
    %1251 = vrot.lane.b32.xlu0 %v1246, 1
    %v1252 = vpop.permute.xlu0 %1251
    %1253 = vrot.lane.b32.xlu0 %v1247, 1
    %v1254 = vpop.permute.xlu0 %1253
    %1255 = vrot.lane.b32.xlu0 %v1248, 1
    %v1256 = vpop.permute.xlu0 %1255
    %s1257 = scalar_lea.vmem [#allocation2], 192
    %v1258 = vld [vmem:[%s1257] sm:$0xff]
    %v1259 = vld [vmem:[%s1257 + $0x8] sm:$0xff]
    %v1260 = vld [vmem:[%s1257 + $0x10] sm:$0xff]
    %v1261 = vld [vmem:[%s1257 + $0x18] sm:$0xff]
    %s1262 = scalar_lea.vmem [#allocation2], 224
    %v1263 = vld [vmem:[%s1262] sm:$0xff]
    %v1264 = vld [vmem:[%s1262 + $0x8] sm:$0xff]
    %v1265 = vld [vmem:[%s1262 + $0x10] sm:$0xff]
    %v1266 = vld [vmem:[%s1262 + $0x18] sm:$0xff]
    %v1268 = vsel %vm314, %v1263, 0
    %v1271 = vsel %vm314, %v1264, 0
    %v1274 = vsel %vm314, %v1265, 0
    %v1277 = vsel %vm314, %v1266, 0
    %1279 = vmatprep.subr.mxu0 0.0
    %1280 = vmatpush1.msra.mxu0 %v1245
    %1281 = vmatprep.subr.mxu0 0.0
    %1282 = vmatpush1.msra.mxu0 %v1246
    %1283 = vmatprep.subr.mxu0 0.0
    %1284 = vmatpush1.msra.mxu0 %v1247
    %1285 = vmatprep.subr.mxu0 0.0
    %1286 = vmatpush1.msra.mxu0 %v1248
    %1287 = vmatprep.subr.mxu0 0.0
    %1288 = vmatpush1.msra.mxu0 0.0
    %1289 = vmatprep.subr.mxu0 0.0
    %1290 = vmatpush1.msra.mxu0 0.0
    %1291 = vmatprep.subr.mxu0 0.0
    %1292 = vmatpush1.msra.mxu0 0.0
    %1293 = vmatprep.subr.mxu0 0.0
    %1294 = vmatpush1.msra.mxu0 0.0
    %1295 = vmatprep.subr.mxu0 0.0
    %1296 = vmatpush1.msra.mxu0 0.0
    %1297 = vmatprep.subr.mxu0 0.0
    %1298 = vmatpush1.msra.mxu0 0.0
    %1299 = vmatprep.subr.mxu0 0.0
    %1300 = vmatpush1.msra.mxu0 0.0
    %1301 = vmatprep.subr.mxu0 0.0
    %1302 = vmatpush1.msra.mxu0 0.0
    %1303 = vmatprep.subr.mxu0 0.0
    %1304 = vmatpush1.msra.mxu0 0.0
    %1305 = vmatprep.subr.mxu0 0.0
    %1306 = vmatpush1.msra.mxu0 0.0
    %1307 = vmatprep.subr.mxu0 0.0
    %1308 = vmatpush1.msra.mxu0 0.0
    %1309 = vmatprep.subr.mxu0 0.0
    %1310 = vmatpush1.msra.mxu0 0.0
    %1311 = vmatprep.subr.mxu0 0.0
    %1312 = vmatpush1.msra.mxu0 0.0
    %1313 = vmatprep.subr.mxu0 0.0
    %1314 = vmatpush1.msra.mxu0 0.0
    %1315 = vmatprep.subr.mxu0 0.0
    %1316 = vmatpush1.msra.mxu0 0.0
    %1317 = vmatprep.subr.mxu0 0.0
    %1318 = vmatpush1.msra.mxu0 0.0
    %1319 = vmatprep.subr.mxu0 0.0
    %1320 = vmatpush1.msra.mxu0 0.0
    %1321 = vmatprep.subr.mxu0 0.0
    %1322 = vmatpush1.msra.mxu0 0.0
    %1323 = vmatprep.subr.mxu0 0.0
    %1324 = vmatpush1.msra.mxu0 0.0
    %1325 = vmatprep.subr.mxu0 0.0
    %1326 = vmatpush1.msra.mxu0 0.0
    %1327 = vmatprep.subr.mxu0 0.0
    %1328 = vmatpush1.msra.mxu0 0.0
    %1329 = vmatprep.subr.mxu0 0.0
    %1330 = vmatpush1.msra.mxu0 0.0
    %1331 = vmatprep.subr.mxu0 0.0
    %1332 = vmatpush1.msra.mxu0 0.0
    %1333 = vmatprep.subr.mxu0 0.0
    %1334 = vmatpush1.msra.mxu0 0.0
    %1335 = vmatprep.subr.mxu0 0.0
    %1336 = vmatpush1.msra.mxu0 0.0
    %1337 = vmatprep.subr.mxu0 0.0
    %1338 = vmatpush1.msra.mxu0 0.0
    %1339 = vmatprep.subr.mxu0 0.0
    %1340 = vmatpush1.msra.mxu0 0.0
    %1341 = vmatprep.subr.mxu0 0.0
    %1342 = vmatpush1.msra.mxu0 0.0
    %1343 = vmatprep.mubr.f32.mxu0 0.0
    %1344 = vmatmul.mubr.f32.gmra.mrb[0].mxu0 %v1268
    %v1345 = vpop.f32.mrb[0].mxu0
    %v1346 = vadd.f32 0.0, %v1345
    %v1347 = vpop.f32.mrb[0].mxu0
    %1348 = vmatprep.mubr.f32.mxu0 0.0
    %1349 = vmatmul.mubr.f32.gmra.mrb[0].mxu0 %v1271
    %v1350 = vpop.f32.mrb[0].mxu0
    %v1351 = vadd.f32 0.0, %v1350
    %v1352 = vpop.f32.mrb[0].mxu0
    %1353 = vmatprep.mubr.f32.mxu0 0.0
    %1354 = vmatmul.mubr.f32.gmra.mrb[0].mxu0 %v1274
    %v1355 = vpop.f32.mrb[0].mxu0
    %v1356 = vadd.f32 0.0, %v1355
    %v1357 = vpop.f32.mrb[0].mxu0
    %1358 = vmatprep.mubr.f32.mxu0 0.0
    %1359 = vmatmul.mubr.f32.gmra.mrb[0].mxu0 %v1277
    %v1360 = vpop.f32.mrb[0].mxu0
    %v1361 = vadd.f32 0.0, %v1360
    %v1362 = vpop.f32.mrb[0].mxu0
    %1363 = vdwg.mxu0
    %v1365 = vsel %vm314, %v1258, 0
    %v1368 = vsel %vm314, %v1259, 0
    %v1371 = vsel %vm314, %v1260, 0
    %v1374 = vsel %vm314, %v1261, 0
    %1376 = vmatprep.subr.mxu0 0.0
    %1377 = vmatpush1.msra.mxu0 %v1250
    %1378 = vmatprep.subr.mxu0 0.0
    %1379 = vmatpush1.msra.mxu0 %v1252
    %1380 = vmatprep.subr.mxu0 0.0
    %1381 = vmatpush1.msra.mxu0 %v1254
    %1382 = vmatprep.subr.mxu0 0.0
    %1383 = vmatpush1.msra.mxu0 %v1256
    %1384 = vmatprep.subr.mxu0 0.0
    %1385 = vmatpush1.msra.mxu0 0.0
    %1386 = vmatprep.subr.mxu0 0.0
    %1387 = vmatpush1.msra.mxu0 0.0
    %1388 = vmatprep.subr.mxu0 0.0
    %1389 = vmatpush1.msra.mxu0 0.0
    %1390 = vmatprep.subr.mxu0 0.0
    %1391 = vmatpush1.msra.mxu0 0.0
    %1392 = vmatprep.subr.mxu0 0.0
    %1393 = vmatpush1.msra.mxu0 0.0
    %1394 = vmatprep.subr.mxu0 0.0
    %1395 = vmatpush1.msra.mxu0 0.0
    %1396 = vmatprep.subr.mxu0 0.0
    %1397 = vmatpush1.msra.mxu0 0.0
    %1398 = vmatprep.subr.mxu0 0.0
    %1399 = vmatpush1.msra.mxu0 0.0
    %1400 = vmatprep.subr.mxu0 0.0
    %1401 = vmatpush1.msra.mxu0 0.0
    %1402 = vmatprep.subr.mxu0 0.0
    %1403 = vmatpush1.msra.mxu0 0.0
    %1404 = vmatprep.subr.mxu0 0.0
    %1405 = vmatpush1.msra.mxu0 0.0
    %1406 = vmatprep.subr.mxu0 0.0
    %1407 = vmatpush1.msra.mxu0 0.0
    %1408 = vmatprep.subr.mxu0 0.0
    %1409 = vmatpush1.msra.mxu0 0.0
    %1410 = vmatprep.subr.mxu0 0.0
    %1411 = vmatpush1.msra.mxu0 0.0
    %1412 = vmatprep.subr.mxu0 0.0
    %1413 = vmatpush1.msra.mxu0 0.0
    %1414 = vmatprep.subr.mxu0 0.0
    %1415 = vmatpush1.msra.mxu0 0.0
    %1416 = vmatprep.subr.mxu0 0.0
    %1417 = vmatpush1.msra.mxu0 0.0
    %1418 = vmatprep.subr.mxu0 0.0
    %1419 = vmatpush1.msra.mxu0 0.0
    %1420 = vmatprep.subr.mxu0 0.0
    %1421 = vmatpush1.msra.mxu0 0.0
    %1422 = vmatprep.subr.mxu0 0.0
    %1423 = vmatpush1.msra.mxu0 0.0
    %1424 = vmatprep.subr.mxu0 0.0
    %1425 = vmatpush1.msra.mxu0 0.0
    %1426 = vmatprep.subr.mxu0 0.0
    %1427 = vmatpush1.msra.mxu0 0.0
    %1428 = vmatprep.subr.mxu0 0.0
    %1429 = vmatpush1.msra.mxu0 0.0
    %1430 = vmatprep.subr.mxu0 0.0
    %1431 = vmatpush1.msra.mxu0 0.0
    %1432 = vmatprep.subr.mxu0 0.0
    %1433 = vmatpush1.msra.mxu0 0.0
    %1434 = vmatprep.subr.mxu0 0.0
    %1435 = vmatpush1.msra.mxu0 0.0
    %1436 = vmatprep.subr.mxu0 0.0
    %1437 = vmatpush1.msra.mxu0 0.0
    %1438 = vmatprep.subr.mxu0 0.0
    %1439 = vmatpush1.msra.mxu0 0.0
    %1440 = vmatprep.mubr.f32.mxu0 0.0
    %1441 = vmatmul.mubr.f32.gmra.mrb[0].mxu0 %v1365
    %v1442 = vpop.f32.mrb[0].mxu0
    %v1443 = vadd.f32 %v1346, %v1442
    %v1444 = vpop.f32.mrb[0].mxu0
    %1445 = vmatprep.mubr.f32.mxu0 0.0
    %1446 = vmatmul.mubr.f32.gmra.mrb[0].mxu0 %v1368
    %v1447 = vpop.f32.mrb[0].mxu0
    %v1448 = vadd.f32 %v1351, %v1447
    %v1449 = vpop.f32.mrb[0].mxu0
    %1450 = vmatprep.mubr.f32.mxu0 0.0
    %1451 = vmatmul.mubr.f32.gmra.mrb[0].mxu0 %v1371
    %v1452 = vpop.f32.mrb[0].mxu0
    %v1453 = vadd.f32 %v1356, %v1452
    %v1454 = vpop.f32.mrb[0].mxu0
    %1455 = vmatprep.mubr.f32.mxu0 0.0
    %1456 = vmatmul.mubr.f32.gmra.mrb[0].mxu0 %v1374
    %v1457 = vpop.f32.mrb[0].mxu0
    %v1458 = vadd.f32 %v1361, %v1457
    %v1459 = vpop.f32.mrb[0].mxu0
    %1460 = vdwg.mxu0
    %1461 = vrot.lane.b32.xlu0 %v1245, 127
    %v1462 = vpop.permute.xlu0 %1461
    %1463 = vrot.lane.b32.xlu0 %v1246, 127
    %v1464 = vpop.permute.xlu0 %1463
    %1465 = vrot.lane.b32.xlu0 %v1247, 127
    %v1466 = vpop.permute.xlu0 %1465
    %1467 = vrot.lane.b32.xlu0 %v1248, 127
    %v1468 = vpop.permute.xlu0 %1467
    %s1469 = scalar_lea.vmem [#allocation2], 256
    %v1470 = vld [vmem:[%s1469] sm:$0xff]
    %v1471 = vld [vmem:[%s1469 + $0x8] sm:$0xff]
    %v1472 = vld [vmem:[%s1469 + $0x10] sm:$0xff]
    %v1473 = vld [vmem:[%s1469 + $0x18] sm:$0xff]
    %v1475 = vsel %vm314, %v1470, 0
    %v1478 = vsel %vm314, %v1471, 0
    %v1481 = vsel %vm314, %v1472, 0
    %v1484 = vsel %vm314, %v1473, 0
    %1486 = vmatprep.subr.mxu0 0.0
    %1487 = vmatpush1.msra.mxu0 %v1462
    %1488 = vmatprep.subr.mxu0 0.0
    %1489 = vmatpush1.msra.mxu0 %v1464
    %1490 = vmatprep.subr.mxu0 0.0
    %1491 = vmatpush1.msra.mxu0 %v1466
    %1492 = vmatprep.subr.mxu0 0.0
    %1493 = vmatpush1.msra.mxu0 %v1468
    %1494 = vmatprep.subr.mxu0 0.0
    %1495 = vmatpush1.msra.mxu0 0.0
    %1496 = vmatprep.subr.mxu0 0.0
    %1497 = vmatpush1.msra.mxu0 0.0
    %1498 = vmatprep.subr.mxu0 0.0
    %1499 = vmatpush1.msra.mxu0 0.0
    %1500 = vmatprep.subr.mxu0 0.0
    %1501 = vmatpush1.msra.mxu0 0.0
    %1502 = vmatprep.subr.mxu0 0.0
    %1503 = vmatpush1.msra.mxu0 0.0
    %1504 = vmatprep.subr.mxu0 0.0
    %1505 = vmatpush1.msra.mxu0 0.0
    %1506 = vmatprep.subr.mxu0 0.0
    %1507 = vmatpush1.msra.mxu0 0.0
    %1508 = vmatprep.subr.mxu0 0.0
    %1509 = vmatpush1.msra.mxu0 0.0
    %1510 = vmatprep.subr.mxu0 0.0
    %1511 = vmatpush1.msra.mxu0 0.0
    %1512 = vmatprep.subr.mxu0 0.0
    %1513 = vmatpush1.msra.mxu0 0.0
    %1514 = vmatprep.subr.mxu0 0.0
    %1515 = vmatpush1.msra.mxu0 0.0
    %1516 = vmatprep.subr.mxu0 0.0
    %1517 = vmatpush1.msra.mxu0 0.0
    %1518 = vmatprep.subr.mxu0 0.0
    %1519 = vmatpush1.msra.mxu0 0.0
    %1520 = vmatprep.subr.mxu0 0.0
    %1521 = vmatpush1.msra.mxu0 0.0
    %1522 = vmatprep.subr.mxu0 0.0
    %1523 = vmatpush1.msra.mxu0 0.0
    %1524 = vmatprep.subr.mxu0 0.0
    %1525 = vmatpush1.msra.mxu0 0.0
    %1526 = vmatprep.subr.mxu0 0.0
    %1527 = vmatpush1.msra.mxu0 0.0
    %1528 = vmatprep.subr.mxu0 0.0
    %1529 = vmatpush1.msra.mxu0 0.0
    %1530 = vmatprep.subr.mxu0 0.0
    %1531 = vmatpush1.msra.mxu0 0.0
    %1532 = vmatprep.subr.mxu0 0.0
    %1533 = vmatpush1.msra.mxu0 0.0
    %1534 = vmatprep.subr.mxu0 0.0
    %1535 = vmatpush1.msra.mxu0 0.0
    %1536 = vmatprep.subr.mxu0 0.0
    %1537 = vmatpush1.msra.mxu0 0.0
    %1538 = vmatprep.subr.mxu0 0.0
    %1539 = vmatpush1.msra.mxu0 0.0
    %1540 = vmatprep.subr.mxu0 0.0
    %1541 = vmatpush1.msra.mxu0 0.0
    %1542 = vmatprep.subr.mxu0 0.0
    %1543 = vmatpush1.msra.mxu0 0.0
    %1544 = vmatprep.subr.mxu0 0.0
    %1545 = vmatpush1.msra.mxu0 0.0
    %1546 = vmatprep.subr.mxu0 0.0
    %1547 = vmatpush1.msra.mxu0 0.0
    %1548 = vmatprep.subr.mxu0 0.0
    %1549 = vmatpush1.msra.mxu0 0.0
    %1550 = vmatprep.mubr.f32.mxu0 0.0
    %1551 = vmatmul.mubr.f32.gmra.mrb[0].mxu0 %v1475
    %v1552 = vpop.f32.mrb[0].mxu0
    %v1553 = vadd.f32 0.0, %v1552
    %v1554 = vpop.f32.mrb[0].mxu0
    %1555 = vmatprep.mubr.f32.mxu0 0.0
    %1556 = vmatmul.mubr.f32.gmra.mrb[0].mxu0 %v1478
    %v1557 = vpop.f32.mrb[0].mxu0
    %v1558 = vadd.f32 0.0, %v1557
    %v1559 = vpop.f32.mrb[0].mxu0
    %1560 = vmatprep.mubr.f32.mxu0 0.0
    %1561 = vmatmul.mubr.f32.gmra.mrb[0].mxu0 %v1481
    %v1562 = vpop.f32.mrb[0].mxu0
    %v1563 = vadd.f32 0.0, %v1562
    %v1564 = vpop.f32.mrb[0].mxu0
    %1565 = vmatprep.mubr.f32.mxu0 0.0
    %1566 = vmatmul.mubr.f32.gmra.mrb[0].mxu0 %v1484
    %v1567 = vpop.f32.mrb[0].mxu0
    %v1568 = vadd.f32 0.0, %v1567
    %v1569 = vpop.f32.mrb[0].mxu0
    %1570 = vdwg.mxu0
    %v1571 = vadd.f32 %v1443, %v1553
    %v1572 = vadd.f32 %v1448, %v1558
    %v1573 = vadd.f32 %v1453, %v1563
    %v1574 = vadd.f32 %v1458, %v1568
    %v1575 = vmul.f32 %v1571, %v143
    %v1576 = vmul.f32 %v1572, %v143
    %v1577 = vmul.f32 %v1573, %v143
    %v1578 = vmul.f32 %v1574, %v143
    %1579 = vadd.xlane.f32.xlu0 %v1575
    %v1580 = vpop.xlane.xlu0 %1579
    %1581 = vadd.xlane.f32.xlu0 %v1576
    %v1582 = vpop.xlane.xlu0 %1581
    %1583 = vadd.xlane.f32.xlu0 %v1577
    %v1584 = vpop.xlane.xlu0 %1583
    %1585 = vadd.xlane.f32.xlu0 %v1578
    %v1586 = vpop.xlane.xlu0 %1585
    %v1587 = vmul.f32 %v1575, %v1571
    %v1588 = vmul.f32 %v1576, %v1572
    %v1589 = vmul.f32 %v1577, %v1573
    %v1590 = vmul.f32 %v1578, %v1574
    %1591 = vadd.xlane.f32.xlu0 %v1587
    %v1592 = vpop.xlane.xlu0 %1591
    %1593 = vadd.xlane.f32.xlu0 %v1588
    %v1594 = vpop.xlane.xlu0 %1593
    %1595 = vadd.xlane.f32.xlu0 %v1589
    %v1596 = vpop.xlane.xlu0 %1595
    %1597 = vadd.xlane.f32.xlu0 %v1590
    %v1598 = vpop.xlane.xlu0 %1597
    %v1599 = vmul.f32 %v1580, 0.03125
    %v1600 = vmul.f32 %v1582, 0.03125
    %v1601 = vmul.f32 %v1584, 0.03125
    %v1602 = vmul.f32 %v1586, 0.03125
    %v1603 = vmul.f32 %v1592, 0.03125
    %v1604 = vmul.f32 %v1594, 0.03125
    %v1605 = vmul.f32 %v1596, 0.03125
    %v1606 = vmul.f32 %v1598, 0.03125
    %v1607 = vmul.f32 %v1599, %v1599
    %v1608 = vmul.f32 %v1600, %v1600
    %v1609 = vmul.f32 %v1601, %v1601
    %v1610 = vmul.f32 %v1602, %v1602
    %v1611 = vsub.f32 %v1603, %v1607
    %v1612 = vsub.f32 %v1604, %v1608
    %v1613 = vsub.f32 %v1605, %v1609
    %v1614 = vsub.f32 %v1606, %v1610
    %v1615 = vadd.f32 %v1611, 1e-05
    %v1616 = vadd.f32 %v1612, 1e-05
    %v1617 = vadd.f32 %v1613, 1e-05
    %v1618 = vadd.f32 %v1614, 1e-05
    %v1619 = vrsqrt.pop %v1615
    %v1620 = vrsqrt.pop %v1616
    %v1621 = vrsqrt.pop %v1617
    %v1622 = vrsqrt.pop %v1618
    %v1623 = vmul.f32 %v185, %v1619
    %v1624 = vmul.f32 %v186, %v1620
    %v1625 = vmul.f32 %v187, %v1621
    %v1626 = vmul.f32 %v188, %v1622
    %1628 = vset.pattern.permute.xlu0 6
    %1629 = vperm.xlu0 %1628, %v1623
    %v1630 = vpop.permute.xlu0 %1629
    %1633 = vset.pattern.permute.xlu0 6
    %1634 = vperm.xlu0 %1633, %v1624
    %v1635 = vpop.permute.xlu0 %1634
    %1638 = vset.pattern.permute.xlu0 6
    %1639 = vperm.xlu0 %1638, %v1625
    %v1640 = vpop.permute.xlu0 %1639
    %1643 = vset.pattern.permute.xlu0 6
    %1644 = vperm.xlu0 %1643, %v1626
    %v1645 = vpop.permute.xlu0 %1644
    %v1647 = vmul.f32 %v1571, %v1630
    %v1648 = vmul.f32 %v1572, %v1635
    %v1649 = vmul.f32 %v1573, %v1640
    %v1650 = vmul.f32 %v1574, %v1645
    %v1651 = vmul.f32 %v1599, %v1623
    %v1652 = vmul.f32 %v1600, %v1624
    %v1653 = vmul.f32 %v1601, %v1625
    %v1654 = vmul.f32 %v1602, %v1626
    %1659 = vrot.lane.b32.xlu0 %v1651, 1
    %v1660 = vpop.permute.xlu0 %1659
    %1661 = vrot.lane.b32.xlu0 %v1652, 1
    %v1662 = vpop.permute.xlu0 %1661
    %1663 = vrot.lane.b32.xlu0 %v1653, 1
    %v1664 = vpop.permute.xlu0 %1663
    %1665 = vrot.lane.b32.xlu0 %v1654, 1
    %v1666 = vpop.permute.xlu0 %1665
    %v1671 = vsub.f32 %v185, %v1660
    %v1672 = vsub.f32 %v186, %v1662
    %v1673 = vsub.f32 %v187, %v1664
    %v1674 = vsub.f32 %v188, %v1666
    %1676 = vset.pattern.permute.xlu0 7
    %1677 = vperm.xlu0 %1676, %v1671
    %v1678 = vpop.permute.xlu0 %1677
    %1681 = vset.pattern.permute.xlu0 7
    %1682 = vperm.xlu0 %1681, %v1672
    %v1683 = vpop.permute.xlu0 %1682
    %1686 = vset.pattern.permute.xlu0 7
    %1687 = vperm.xlu0 %1686, %v1673
    %v1688 = vpop.permute.xlu0 %1687
    %1691 = vset.pattern.permute.xlu0 7
    %1692 = vperm.xlu0 %1691, %v1674
    %v1693 = vpop.permute.xlu0 %1692
    %v1695 = vadd.f32 %v1647, %v1678
    %v1696 = vadd.f32 %v1648, %v1683
    %v1697 = vadd.f32 %v1649, %v1688
    %v1698 = vadd.f32 %v1650, %v1693
    %vm1699 = vcmp.gt.f32.partialorder %v1695, 0.0
    %vm1700 = vcmp.gt.f32.partialorder %v1696, 0.0
    %vm1701 = vcmp.gt.f32.partialorder %v1697, 0.0
    %vm1702 = vcmp.gt.f32.partialorder %v1698, 0.0
    %v1703 = vmul.f32 %v1695, 1.442695
    %v1704 = vpow.pop %v1703
    %v1705 = vmul.f32 %v1696, 1.442695
    %v1706 = vpow.pop %v1705
    %v1707 = vmul.f32 %v1697, 1.442695
    %v1708 = vpow.pop %v1707
    %v1709 = vmul.f32 %v1698, 1.442695
    %v1710 = vpow.pop %v1709
    %v1711 = vsub.f32 %v1704, 1.0
    %v1712 = vsub.f32 %v1706, 1.0
    %v1713 = vsub.f32 %v1708, 1.0
    %v1714 = vsub.f32 %v1710, 1.0
    %v1715 = vsel %vm1699, %v1695, %v1711
    %v1716 = vsel %vm1700, %v1696, %v1712
    %v1717 = vsel %vm1701, %v1697, %v1713
    %v1718 = vsel %vm1702, %v1698, %v1714
    %v1719 = vmul.f32 %v1715, %v143
    %v1720 = vmul.f32 %v1716, %v143
    %v1721 = vmul.f32 %v1717, %v143
    %v1722 = vmul.f32 %v1718, %v143
    %1723 = vrot.lane.b32.xlu0 %v1719, 1
    %v1724 = vpop.permute.xlu0 %1723
    %1725 = vrot.lane.b32.xlu0 %v1720, 1
    %v1726 = vpop.permute.xlu0 %1725
    %1727 = vrot.lane.b32.xlu0 %v1721, 1
    %v1728 = vpop.permute.xlu0 %1727
    %1729 = vrot.lane.b32.xlu0 %v1722, 1
    %v1730 = vpop.permute.xlu0 %1729
    %s1731 = scalar_lea.vmem [#allocation2], 288
    %v1732 = vld [vmem:[%s1731] sm:$0xff]
    %v1733 = vld [vmem:[%s1731 + $0x8] sm:$0xff]
    %v1734 = vld [vmem:[%s1731 + $0x10] sm:$0xff]
    %v1735 = vld [vmem:[%s1731 + $0x18] sm:$0xff]
    %s1736 = scalar_lea.vmem [#allocation2], 320
    %v1737 = vld [vmem:[%s1736] sm:$0xff]
    %v1738 = vld [vmem:[%s1736 + $0x8] sm:$0xff]
    %v1739 = vld [vmem:[%s1736 + $0x10] sm:$0xff]
    %v1740 = vld [vmem:[%s1736 + $0x18] sm:$0xff]
    %v1742 = vsel %vm314, %v1737, 0
    %v1745 = vsel %vm314, %v1738, 0
    %v1748 = vsel %vm314, %v1739, 0
    %v1751 = vsel %vm314, %v1740, 0
    %1753 = vmatprep.subr.mxu0 0.0
    %1754 = vmatpush1.msra.mxu0 %v1719
    %1755 = vmatprep.subr.mxu0 0.0
    %1756 = vmatpush1.msra.mxu0 %v1720
    %1757 = vmatprep.subr.mxu0 0.0
    %1758 = vmatpush1.msra.mxu0 %v1721
    %1759 = vmatprep.subr.mxu0 0.0
    %1760 = vmatpush1.msra.mxu0 %v1722
    %1761 = vmatprep.subr.mxu0 0.0
    %1762 = vmatpush1.msra.mxu0 0.0
    %1763 = vmatprep.subr.mxu0 0.0
    %1764 = vmatpush1.msra.mxu0 0.0
    %1765 = vmatprep.subr.mxu0 0.0
    %1766 = vmatpush1.msra.mxu0 0.0
    %1767 = vmatprep.subr.mxu0 0.0
    %1768 = vmatpush1.msra.mxu0 0.0
    %1769 = vmatprep.subr.mxu0 0.0
    %1770 = vmatpush1.msra.mxu0 0.0
    %1771 = vmatprep.subr.mxu0 0.0
    %1772 = vmatpush1.msra.mxu0 0.0
    %1773 = vmatprep.subr.mxu0 0.0
    %1774 = vmatpush1.msra.mxu0 0.0
    %1775 = vmatprep.subr.mxu0 0.0
    %1776 = vmatpush1.msra.mxu0 0.0
    %1777 = vmatprep.subr.mxu0 0.0
    %1778 = vmatpush1.msra.mxu0 0.0
    %1779 = vmatprep.subr.mxu0 0.0
    %1780 = vmatpush1.msra.mxu0 0.0
    %1781 = vmatprep.subr.mxu0 0.0
    %1782 = vmatpush1.msra.mxu0 0.0
    %1783 = vmatprep.subr.mxu0 0.0
    %1784 = vmatpush1.msra.mxu0 0.0
    %1785 = vmatprep.subr.mxu0 0.0
    %1786 = vmatpush1.msra.mxu0 0.0
    %1787 = vmatprep.subr.mxu0 0.0
    %1788 = vmatpush1.msra.mxu0 0.0
    %1789 = vmatprep.subr.mxu0 0.0
    %1790 = vmatpush1.msra.mxu0 0.0
    %1791 = vmatprep.subr.mxu0 0.0
    %1792 = vmatpush1.msra.mxu0 0.0
    %1793 = vmatprep.subr.mxu0 0.0
    %1794 = vmatpush1.msra.mxu0 0.0
    %1795 = vmatprep.subr.mxu0 0.0
    %1796 = vmatpush1.msra.mxu0 0.0
    %1797 = vmatprep.subr.mxu0 0.0
    %1798 = vmatpush1.msra.mxu0 0.0
    %1799 = vmatprep.subr.mxu0 0.0
    %1800 = vmatpush1.msra.mxu0 0.0
    %1801 = vmatprep.subr.mxu0 0.0
    %1802 = vmatpush1.msra.mxu0 0.0
    %1803 = vmatprep.subr.mxu0 0.0
    %1804 = vmatpush1.msra.mxu0 0.0
    %1805 = vmatprep.subr.mxu0 0.0
    %1806 = vmatpush1.msra.mxu0 0.0
    %1807 = vmatprep.subr.mxu0 0.0
    %1808 = vmatpush1.msra.mxu0 0.0
    %1809 = vmatprep.subr.mxu0 0.0
    %1810 = vmatpush1.msra.mxu0 0.0
    %1811 = vmatprep.subr.mxu0 0.0
    %1812 = vmatpush1.msra.mxu0 0.0
    %1813 = vmatprep.subr.mxu0 0.0
    %1814 = vmatpush1.msra.mxu0 0.0
    %1815 = vmatprep.subr.mxu0 0.0
    %1816 = vmatpush1.msra.mxu0 0.0
    %1817 = vmatprep.mubr.f32.mxu0 0.0
    %1818 = vmatmul.mubr.f32.gmra.mrb[0].mxu0 %v1742
    %v1819 = vpop.f32.mrb[0].mxu0
    %v1820 = vadd.f32 0.0, %v1819
    %v1821 = vpop.f32.mrb[0].mxu0
    %1822 = vmatprep.mubr.f32.mxu0 0.0
    %1823 = vmatmul.mubr.f32.gmra.mrb[0].mxu0 %v1745
    %v1824 = vpop.f32.mrb[0].mxu0
    %v1825 = vadd.f32 0.0, %v1824
    %v1826 = vpop.f32.mrb[0].mxu0
    %1827 = vmatprep.mubr.f32.mxu0 0.0
    %1828 = vmatmul.mubr.f32.gmra.mrb[0].mxu0 %v1748
    %v1829 = vpop.f32.mrb[0].mxu0
    %v1830 = vadd.f32 0.0, %v1829
    %v1831 = vpop.f32.mrb[0].mxu0
    %1832 = vmatprep.mubr.f32.mxu0 0.0
    %1833 = vmatmul.mubr.f32.gmra.mrb[0].mxu0 %v1751
    %v1834 = vpop.f32.mrb[0].mxu0
    %v1835 = vadd.f32 0.0, %v1834
    %v1836 = vpop.f32.mrb[0].mxu0
    %1837 = vdwg.mxu0
    %v1839 = vsel %vm314, %v1732, 0
    %v1842 = vsel %vm314, %v1733, 0
    %v1845 = vsel %vm314, %v1734, 0
    %v1848 = vsel %vm314, %v1735, 0
    %1850 = vmatprep.subr.mxu0 0.0
    %1851 = vmatpush1.msra.mxu0 %v1724
    %1852 = vmatprep.subr.mxu0 0.0
    %1853 = vmatpush1.msra.mxu0 %v1726
    %1854 = vmatprep.subr.mxu0 0.0
    %1855 = vmatpush1.msra.mxu0 %v1728
    %1856 = vmatprep.subr.mxu0 0.0
    %1857 = vmatpush1.msra.mxu0 %v1730
    %1858 = vmatprep.subr.mxu0 0.0
    %1859 = vmatpush1.msra.mxu0 0.0
    %1860 = vmatprep.subr.mxu0 0.0
    %1861 = vmatpush1.msra.mxu0 0.0
    %1862 = vmatprep.subr.mxu0 0.0
    %1863 = vmatpush1.msra.mxu0 0.0
    %1864 = vmatprep.subr.mxu0 0.0
    %1865 = vmatpush1.msra.mxu0 0.0
    %1866 = vmatprep.subr.mxu0 0.0
    %1867 = vmatpush1.msra.mxu0 0.0
    %1868 = vmatprep.subr.mxu0 0.0
    %1869 = vmatpush1.msra.mxu0 0.0
    %1870 = vmatprep.subr.mxu0 0.0
    %1871 = vmatpush1.msra.mxu0 0.0
    %1872 = vmatprep.subr.mxu0 0.0
    %1873 = vmatpush1.msra.mxu0 0.0
    %1874 = vmatprep.subr.mxu0 0.0
    %1875 = vmatpush1.msra.mxu0 0.0
    %1876 = vmatprep.subr.mxu0 0.0
    %1877 = vmatpush1.msra.mxu0 0.0
    %1878 = vmatprep.subr.mxu0 0.0
    %1879 = vmatpush1.msra.mxu0 0.0
    %1880 = vmatprep.subr.mxu0 0.0
    %1881 = vmatpush1.msra.mxu0 0.0
    %1882 = vmatprep.subr.mxu0 0.0
    %1883 = vmatpush1.msra.mxu0 0.0
    %1884 = vmatprep.subr.mxu0 0.0
    %1885 = vmatpush1.msra.mxu0 0.0
    %1886 = vmatprep.subr.mxu0 0.0
    %1887 = vmatpush1.msra.mxu0 0.0
    %1888 = vmatprep.subr.mxu0 0.0
    %1889 = vmatpush1.msra.mxu0 0.0
    %1890 = vmatprep.subr.mxu0 0.0
    %1891 = vmatpush1.msra.mxu0 0.0
    %1892 = vmatprep.subr.mxu0 0.0
    %1893 = vmatpush1.msra.mxu0 0.0
    %1894 = vmatprep.subr.mxu0 0.0
    %1895 = vmatpush1.msra.mxu0 0.0
    %1896 = vmatprep.subr.mxu0 0.0
    %1897 = vmatpush1.msra.mxu0 0.0
    %1898 = vmatprep.subr.mxu0 0.0
    %1899 = vmatpush1.msra.mxu0 0.0
    %1900 = vmatprep.subr.mxu0 0.0
    %1901 = vmatpush1.msra.mxu0 0.0
    %1902 = vmatprep.subr.mxu0 0.0
    %1903 = vmatpush1.msra.mxu0 0.0
    %1904 = vmatprep.subr.mxu0 0.0
    %1905 = vmatpush1.msra.mxu0 0.0
    %1906 = vmatprep.subr.mxu0 0.0
    %1907 = vmatpush1.msra.mxu0 0.0
    %1908 = vmatprep.subr.mxu0 0.0
    %1909 = vmatpush1.msra.mxu0 0.0
    %1910 = vmatprep.subr.mxu0 0.0
    %1911 = vmatpush1.msra.mxu0 0.0
    %1912 = vmatprep.subr.mxu0 0.0
    %1913 = vmatpush1.msra.mxu0 0.0
    %1914 = vmatprep.mubr.f32.mxu0 0.0
    %1915 = vmatmul.mubr.f32.gmra.mrb[0].mxu0 %v1839
    %v1916 = vpop.f32.mrb[0].mxu0
    %v1917 = vadd.f32 %v1820, %v1916
    %v1918 = vpop.f32.mrb[0].mxu0
    %1919 = vmatprep.mubr.f32.mxu0 0.0
    %1920 = vmatmul.mubr.f32.gmra.mrb[0].mxu0 %v1842
    %v1921 = vpop.f32.mrb[0].mxu0
    %v1922 = vadd.f32 %v1825, %v1921
    %v1923 = vpop.f32.mrb[0].mxu0
    %1924 = vmatprep.mubr.f32.mxu0 0.0
    %1925 = vmatmul.mubr.f32.gmra.mrb[0].mxu0 %v1845
    %v1926 = vpop.f32.mrb[0].mxu0
    %v1927 = vadd.f32 %v1830, %v1926
    %v1928 = vpop.f32.mrb[0].mxu0
    %1929 = vmatprep.mubr.f32.mxu0 0.0
    %1930 = vmatmul.mubr.f32.gmra.mrb[0].mxu0 %v1848
    %v1931 = vpop.f32.mrb[0].mxu0
    %v1932 = vadd.f32 %v1835, %v1931
    %v1933 = vpop.f32.mrb[0].mxu0
    %1934 = vdwg.mxu0
    %1935 = vrot.lane.b32.xlu0 %v1719, 127
    %v1936 = vpop.permute.xlu0 %1935
    %1937 = vrot.lane.b32.xlu0 %v1720, 127
    %v1938 = vpop.permute.xlu0 %1937
    %1939 = vrot.lane.b32.xlu0 %v1721, 127
    %v1940 = vpop.permute.xlu0 %1939
    %1941 = vrot.lane.b32.xlu0 %v1722, 127
    %v1942 = vpop.permute.xlu0 %1941
    %s1943 = scalar_lea.vmem [#allocation2], 352
    %v1944 = vld [vmem:[%s1943] sm:$0xff]
    %v1945 = vld [vmem:[%s1943 + $0x8] sm:$0xff]
    %v1946 = vld [vmem:[%s1943 + $0x10] sm:$0xff]
    %v1947 = vld [vmem:[%s1943 + $0x18] sm:$0xff]
    %v1949 = vsel %vm314, %v1944, 0
    %v1952 = vsel %vm314, %v1945, 0
    %v1955 = vsel %vm314, %v1946, 0
    %v1958 = vsel %vm314, %v1947, 0
    %1960 = vmatprep.subr.mxu0 0.0
    %1961 = vmatpush1.msra.mxu0 %v1936
    %1962 = vmatprep.subr.mxu0 0.0
    %1963 = vmatpush1.msra.mxu0 %v1938
    %1964 = vmatprep.subr.mxu0 0.0
    %1965 = vmatpush1.msra.mxu0 %v1940
    %1966 = vmatprep.subr.mxu0 0.0
    %1967 = vmatpush1.msra.mxu0 %v1942
    %1968 = vmatprep.subr.mxu0 0.0
    %1969 = vmatpush1.msra.mxu0 0.0
    %1970 = vmatprep.subr.mxu0 0.0
    %1971 = vmatpush1.msra.mxu0 0.0
    %1972 = vmatprep.subr.mxu0 0.0
    %1973 = vmatpush1.msra.mxu0 0.0
    %1974 = vmatprep.subr.mxu0 0.0
    %1975 = vmatpush1.msra.mxu0 0.0
    %1976 = vmatprep.subr.mxu0 0.0
    %1977 = vmatpush1.msra.mxu0 0.0
    %1978 = vmatprep.subr.mxu0 0.0
    %1979 = vmatpush1.msra.mxu0 0.0
    %1980 = vmatprep.subr.mxu0 0.0
    %1981 = vmatpush1.msra.mxu0 0.0
    %1982 = vmatprep.subr.mxu0 0.0
    %1983 = vmatpush1.msra.mxu0 0.0
    %1984 = vmatprep.subr.mxu0 0.0
    %1985 = vmatpush1.msra.mxu0 0.0
    %1986 = vmatprep.subr.mxu0 0.0
    %1987 = vmatpush1.msra.mxu0 0.0
    %1988 = vmatprep.subr.mxu0 0.0
    %1989 = vmatpush1.msra.mxu0 0.0
    %1990 = vmatprep.subr.mxu0 0.0
    %1991 = vmatpush1.msra.mxu0 0.0
    %1992 = vmatprep.subr.mxu0 0.0
    %1993 = vmatpush1.msra.mxu0 0.0
    %1994 = vmatprep.subr.mxu0 0.0
    %1995 = vmatpush1.msra.mxu0 0.0
    %1996 = vmatprep.subr.mxu0 0.0
    %1997 = vmatpush1.msra.mxu0 0.0
    %1998 = vmatprep.subr.mxu0 0.0
    %1999 = vmatpush1.msra.mxu0 0.0
    %2000 = vmatprep.subr.mxu0 0.0
    %2001 = vmatpush1.msra.mxu0 0.0
    %2002 = vmatprep.subr.mxu0 0.0
    %2003 = vmatpush1.msra.mxu0 0.0
    %2004 = vmatprep.subr.mxu0 0.0
    %2005 = vmatpush1.msra.mxu0 0.0
    %2006 = vmatprep.subr.mxu0 0.0
    %2007 = vmatpush1.msra.mxu0 0.0
    %2008 = vmatprep.subr.mxu0 0.0
    %2009 = vmatpush1.msra.mxu0 0.0
    %2010 = vmatprep.subr.mxu0 0.0
    %2011 = vmatpush1.msra.mxu0 0.0
    %2012 = vmatprep.subr.mxu0 0.0
    %2013 = vmatpush1.msra.mxu0 0.0
    %2014 = vmatprep.subr.mxu0 0.0
    %2015 = vmatpush1.msra.mxu0 0.0
    %2016 = vmatprep.subr.mxu0 0.0
    %2017 = vmatpush1.msra.mxu0 0.0
    %2018 = vmatprep.subr.mxu0 0.0
    %2019 = vmatpush1.msra.mxu0 0.0
    %2020 = vmatprep.subr.mxu0 0.0
    %2021 = vmatpush1.msra.mxu0 0.0
    %2022 = vmatprep.subr.mxu0 0.0
    %2023 = vmatpush1.msra.mxu0 0.0
    %2024 = vmatprep.mubr.f32.mxu0 0.0
    %2025 = vmatmul.mubr.f32.gmra.mrb[0].mxu0 %v1949
    %v2026 = vpop.f32.mrb[0].mxu0
    %v2027 = vadd.f32 0.0, %v2026
    %v2028 = vpop.f32.mrb[0].mxu0
    %2029 = vmatprep.mubr.f32.mxu0 0.0
    %2030 = vmatmul.mubr.f32.gmra.mrb[0].mxu0 %v1952
    %v2031 = vpop.f32.mrb[0].mxu0
    %v2032 = vadd.f32 0.0, %v2031
    %v2033 = vpop.f32.mrb[0].mxu0
    %2034 = vmatprep.mubr.f32.mxu0 0.0
    %2035 = vmatmul.mubr.f32.gmra.mrb[0].mxu0 %v1955
    %v2036 = vpop.f32.mrb[0].mxu0
    %v2037 = vadd.f32 0.0, %v2036
    %v2038 = vpop.f32.mrb[0].mxu0
    %2039 = vmatprep.mubr.f32.mxu0 0.0
    %2040 = vmatmul.mubr.f32.gmra.mrb[0].mxu0 %v1958
    %v2041 = vpop.f32.mrb[0].mxu0
    %v2042 = vadd.f32 0.0, %v2041
    %v2043 = vpop.f32.mrb[0].mxu0
    %2044 = vdwg.mxu0
    %v2045 = vadd.f32 %v1917, %v2027
    %v2046 = vadd.f32 %v1922, %v2032
    %v2047 = vadd.f32 %v1927, %v2037
    %v2048 = vadd.f32 %v1932, %v2042
    %v2049 = vmul.f32 %v2045, %v143
    %v2050 = vmul.f32 %v2046, %v143
    %v2051 = vmul.f32 %v2047, %v143
    %v2052 = vmul.f32 %v2048, %v143
    %2053 = vadd.xlane.f32.xlu0 %v2049
    %v2054 = vpop.xlane.xlu0 %2053
    %2055 = vadd.xlane.f32.xlu0 %v2050
    %v2056 = vpop.xlane.xlu0 %2055
    %2057 = vadd.xlane.f32.xlu0 %v2051
    %v2058 = vpop.xlane.xlu0 %2057
    %2059 = vadd.xlane.f32.xlu0 %v2052
    %v2060 = vpop.xlane.xlu0 %2059
    %v2061 = vmul.f32 %v2049, %v2045
    %v2062 = vmul.f32 %v2050, %v2046
    %v2063 = vmul.f32 %v2051, %v2047
    %v2064 = vmul.f32 %v2052, %v2048
    %2065 = vadd.xlane.f32.xlu0 %v2061
    %v2066 = vpop.xlane.xlu0 %2065
    %2067 = vadd.xlane.f32.xlu0 %v2062
    %v2068 = vpop.xlane.xlu0 %2067
    %2069 = vadd.xlane.f32.xlu0 %v2063
    %v2070 = vpop.xlane.xlu0 %2069
    %2071 = vadd.xlane.f32.xlu0 %v2064
    %v2072 = vpop.xlane.xlu0 %2071
    %v2073 = vmul.f32 %v2054, 0.03125
    %v2074 = vmul.f32 %v2056, 0.03125
    %v2075 = vmul.f32 %v2058, 0.03125
    %v2076 = vmul.f32 %v2060, 0.03125
    %v2077 = vmul.f32 %v2066, 0.03125
    %v2078 = vmul.f32 %v2068, 0.03125
    %v2079 = vmul.f32 %v2070, 0.03125
    %v2080 = vmul.f32 %v2072, 0.03125
    %v2081 = vmul.f32 %v2073, %v2073
    %v2082 = vmul.f32 %v2074, %v2074
    %v2083 = vmul.f32 %v2075, %v2075
    %v2084 = vmul.f32 %v2076, %v2076
    %v2085 = vsub.f32 %v2077, %v2081
    %v2086 = vsub.f32 %v2078, %v2082
    %v2087 = vsub.f32 %v2079, %v2083
    %v2088 = vsub.f32 %v2080, %v2084
    %v2089 = vadd.f32 %v2085, 1e-05
    %v2090 = vadd.f32 %v2086, 1e-05
    %v2091 = vadd.f32 %v2087, 1e-05
    %v2092 = vadd.f32 %v2088, 1e-05
    %v2093 = vrsqrt.pop %v2089
    %v2094 = vrsqrt.pop %v2090
    %v2095 = vrsqrt.pop %v2091
    %v2096 = vrsqrt.pop %v2092
    %v2097 = vmul.f32 %v185, %v2093
    %v2098 = vmul.f32 %v186, %v2094
    %v2099 = vmul.f32 %v187, %v2095
    %v2100 = vmul.f32 %v188, %v2096
    %2102 = vset.pattern.permute.xlu0 8
    %2103 = vperm.xlu0 %2102, %v2097
    %v2104 = vpop.permute.xlu0 %2103
    %2107 = vset.pattern.permute.xlu0 8
    %2108 = vperm.xlu0 %2107, %v2098
    %v2109 = vpop.permute.xlu0 %2108
    %2112 = vset.pattern.permute.xlu0 8
    %2113 = vperm.xlu0 %2112, %v2099
    %v2114 = vpop.permute.xlu0 %2113
    %2117 = vset.pattern.permute.xlu0 8
    %2118 = vperm.xlu0 %2117, %v2100
    %v2119 = vpop.permute.xlu0 %2118
    %v2121 = vmul.f32 %v2045, %v2104
    %v2122 = vmul.f32 %v2046, %v2109
    %v2123 = vmul.f32 %v2047, %v2114
    %v2124 = vmul.f32 %v2048, %v2119
    %v2125 = vmul.f32 %v2073, %v2097
    %v2126 = vmul.f32 %v2074, %v2098
    %v2127 = vmul.f32 %v2075, %v2099
    %v2128 = vmul.f32 %v2076, %v2100
    %2133 = vrot.lane.b32.xlu0 %v2125, 1
    %v2134 = vpop.permute.xlu0 %2133
    %2135 = vrot.lane.b32.xlu0 %v2126, 1
    %v2136 = vpop.permute.xlu0 %2135
    %2137 = vrot.lane.b32.xlu0 %v2127, 1
    %v2138 = vpop.permute.xlu0 %2137
    %2139 = vrot.lane.b32.xlu0 %v2128, 1
    %v2140 = vpop.permute.xlu0 %2139
    %v2145 = vsub.f32 %v185, %v2134
    %v2146 = vsub.f32 %v186, %v2136
    %v2147 = vsub.f32 %v187, %v2138
    %v2148 = vsub.f32 %v188, %v2140
    %2150 = vset.pattern.permute.xlu0 9
    %2151 = vperm.xlu0 %2150, %v2145
    %v2152 = vpop.permute.xlu0 %2151
    %2155 = vset.pattern.permute.xlu0 9
    %2156 = vperm.xlu0 %2155, %v2146
    %v2157 = vpop.permute.xlu0 %2156
    %2160 = vset.pattern.permute.xlu0 9
    %2161 = vperm.xlu0 %2160, %v2147
    %v2162 = vpop.permute.xlu0 %2161
    %2165 = vset.pattern.permute.xlu0 9
    %2166 = vperm.xlu0 %2165, %v2148
    %v2167 = vpop.permute.xlu0 %2166
    %v2169 = vadd.f32 %v2121, %v2152
    %v2170 = vadd.f32 %v2122, %v2157
    %v2171 = vadd.f32 %v2123, %v2162
    %v2172 = vadd.f32 %v2124, %v2167
    %v2173 = vadd.f32 %v2169, %v1245
    %v2174 = vadd.f32 %v2170, %v1246
    %v2175 = vadd.f32 %v2171, %v1247
    %v2176 = vadd.f32 %v2172, %v1248
    %vm2177 = vcmp.gt.f32.partialorder %v2173, 0.0
    %vm2178 = vcmp.gt.f32.partialorder %v2174, 0.0
    %vm2179 = vcmp.gt.f32.partialorder %v2175, 0.0
    %vm2180 = vcmp.gt.f32.partialorder %v2176, 0.0
    %v2181 = vmul.f32 %v2173, 1.442695
    %v2182 = vpow.pop %v2181
    %v2183 = vmul.f32 %v2174, 1.442695
    %v2184 = vpow.pop %v2183
    %v2185 = vmul.f32 %v2175, 1.442695
    %v2186 = vpow.pop %v2185
    %v2187 = vmul.f32 %v2176, 1.442695
    %v2188 = vpow.pop %v2187
    %v2189 = vsub.f32 %v2182, 1.0
    %v2190 = vsub.f32 %v2184, 1.0
    %v2191 = vsub.f32 %v2186, 1.0
    %v2192 = vsub.f32 %v2188, 1.0
    %v2193 = vsel %vm2177, %v2173, %v2189
    %v2194 = vsel %vm2178, %v2174, %v2190
    %v2195 = vsel %vm2179, %v2175, %v2191
    %v2196 = vsel %vm2180, %v2176, %v2192
    %v2197 = vmul.f32 %v2193, %v143
    %v2198 = vmul.f32 %v2194, %v143
    %v2199 = vmul.f32 %v2195, %v143
    %v2200 = vmul.f32 %v2196, %v143
    %2201 = vst [vmem:[#allocation5] sm:$0xff] %v2197
    %2202 = vst [vmem:[#allocation5 + $0x8] sm:$0xff] %v2198
    %2203 = vst [vmem:[#allocation5 + $0x10] sm:$0xff] %v2199
    %2204 = vst [vmem:[#allocation5 + $0x18] sm:$0xff] %v2200
    // Predicated region
    $region26: #{tpu_custom_call.1} parent=1 // pred_check
      _
    $region27: #{tpu_custom_call.1} parent=1 // pred_check_branch
      %2206 = sbr.rel (0) target = $region29
    $region28: #{tpu_custom_call.1} parent=1 // pred_region
      %s2208 = ssub.s32 512, 512
      %2209 = vsyncadd [#allocation4], %s2208
      %s2210 = sshll.u32 [#allocation5], 4
      %s2211 = int_to_ptr.vmem [resolvable:$true] %s2210
      %2216 = dma.vmem_to_hbm [thread:$0]  %s2211, 512, %s5, [#allocation4], 128, 128, 8
    $region29: #{tpu_custom_call.1} parent=1 // pred_fallthru
      _
    // Predicated region
    $region30: #{tpu_custom_call.1} parent=1 // pred_check
      _
    $region31: #{tpu_custom_call.1} parent=1 // pred_check_branch
      %2218 = sbr.rel (0) target = $region33
    $region32: #{tpu_custom_call.1} parent=1 // pred_region
      %2219 = dma.done [#allocation4], 512
    $region33: #{tpu_custom_call.1} parent=1 // pred_fallthru
      _
    %2220 = vsyncpa [#allocation3], 1
    %2221 = vsyncpa [#allocation4], 1

</llo_original>
